<compile_context>
chip_gen: v6e
topology: v6e:2x2x1
jax: 0.10.0
libtpu: 0.0.40
codegen_flags: <defaults>
</compile_context>

<pallas_src>
import functools

import jax
import jax.numpy as jnp
from jax.experimental import pallas as pl
from jax.experimental.pallas import tpu as pltpu

# Problem sizes (small, VMEM-resident)
N_NODES = 128          # number of graph nodes
IN_CH = 32             # in_channels
HID_CH = 64            # hidden_channels
OUT_CH = 16            # out_channels
K_PROP = 10            # APPNP propagation steps
ALPHA = 0.1            # APPNP teleport probability
DROPOUT_P = 0.5        # unused at inference (training=False -> identity)

LANE = 128             # TPU lane width — pad channel dims to this


def _round_up(x, m):
    return ((x + m - 1) // m) * m


def appnp_kernel(x_ref, adj_ref, w1_ref, b1_ref, w2_ref, b2_ref, o_ref,
                 *, k_prop, alpha, out_ch):
    # --- MLP part (lin1 -> relu -> lin2); dropout is identity in eval mode ---
    # TODO(synk): training-mode dropout would need pltpu.prng_seed /
    # prng_random_bits inside the kernel; eval-mode forward is implemented.
    x = x_ref[...]
    h = jnp.dot(x, w1_ref[...], preferred_element_type=jnp.float32) + b1_ref[...]
    h = jnp.maximum(h, 0.0)                                   # relu
    # w2/b2 are zero-padded to LANE output columns -> z0 is [N, LANE], with
    # padded columns exactly zero (zero weights + zero bias).
    z0 = jnp.dot(h, w2_ref[...], preferred_element_type=jnp.float32) + b2_ref[...]

    # --- APPNP propagation: z <- (1-alpha) * A_hat @ z + alpha * z0 ---
    # Hoist loop invariants off the serial critical path; bf16 matmul inputs,
    # f32 accumulation and f32 carried state.
    adj_s = ((1.0 - alpha) * adj_ref[...]).astype(jnp.bfloat16)
    az0 = alpha * z0

    def body(_, z):
        return jnp.dot(adj_s, z.astype(jnp.bfloat16),
                       preferred_element_type=jnp.float32) + az0

    z = jax.lax.fori_loop(0, k_prop, body, z0, unroll=True)

    # --- log_softmax over dim=1, restricted to the first `out_ch` columns ---
    col = jax.lax.broadcasted_iota(jnp.int32, z.shape, dimension=1)
    valid = col < out_ch
    zm = jnp.where(valid, z, jnp.float32(-1e30))   # exclude padded cols
    m = jnp.max(zm, axis=1, keepdims=True)
    lse = jnp.log(jnp.sum(jnp.exp(zm - m), axis=1, keepdims=True)) + m
    # Lane-dense full-width store; padded columns hold garbage and are sliced
    # away in the wrapper.
    o_ref[...] = (z - lse).astype(o_ref.dtype)


def appnp_forward(x, adj, w1, b1, w2, b2, *, k_prop=K_PROP, alpha=ALPHA):
    n, in_ch = x.shape
    hid_ch = w1.shape[1]
    out_ch = w2.shape[1]

    hid_p = _round_up(hid_ch, LANE)
    out_p = _round_up(out_ch, LANE)

    # Zero-pad parameters ONCE in the wrapper so every in-kernel matmul result
    # (and the output store) is lane-dense (last dim = multiple of 128).
    w1_p = jnp.pad(w1, ((0, 0), (0, hid_p - hid_ch)))
    b1_p = jnp.pad(b1, ((0, 0), (0, hid_p - hid_ch)))
    w2_p = jnp.pad(w2, ((0, hid_p - hid_ch), (0, out_p - out_ch)))
    b2_p = jnp.pad(b2, ((0, 0), (0, out_p - out_ch)))

    kernel = functools.partial(appnp_kernel, k_prop=k_prop, alpha=alpha,
                               out_ch=out_ch)

    # Advisory cost estimate so XLA schedules/overlaps this call sensibly.
    flops = (2 * n * (in_ch * hid_p + hid_p * out_p)
             + 2 * k_prop * n * n * out_p)
    transcendentals = n * out_p + n                      # exp + log
    bytes_accessed = 4 * (x.size + adj.size + w1_p.size + b1_p.size
                          + w2_p.size + b2_p.size + n * out_p)
    cost = pl.CostEstimate(flops=flops,
                           transcendentals=transcendentals,
                           bytes_accessed=bytes_accessed)

    # Everything fits comfortably in VMEM at these sizes: one grid step and
    # full-array blocks (block_shape == array shape satisfies the TPU tiling
    # rule).  NOTE: if N grows past a few thousand nodes, this must become a
    # row-tiled grid instead of single-shot full-array blocks.
    full = lambda shape: pl.BlockSpec(shape, lambda: tuple(0 for _ in shape))
    out_padded = pl.pallas_call(
        kernel,
        out_shape=jax.ShapeDtypeStruct((n, out_p), jnp.float32),
        in_specs=[
            full(x.shape),
            full(adj.shape),
            full(w1_p.shape),
            full(b1_p.shape),
            full(w2_p.shape),
            full(b2_p.shape),
        ],
        out_specs=full((n, out_p)),
        cost_estimate=cost,
        compiler_params=pltpu.CompilerParams(vmem_limit_bytes=32 * 1024 * 1024),
    )(x, adj, w1_p, b1_p, w2_p, b2_p)

    return out_padded[:, :out_ch]


def make_params(key):
    """Deterministic Linear-style init (uniform(-1/sqrt(fan_in), 1/sqrt(fan_in)))."""
    k1, k2, k3, k4 = jax.random.split(key, 4)
    lim1 = 1.0 / jnp.sqrt(IN_CH)
    lim2 = 1.0 / jnp.sqrt(HID_CH)
    w1 = jax.random.uniform(k1, (IN_CH, HID_CH), jnp.float32, -lim1, lim1)
    b1 = jax.random.uniform(k2, (1, HID_CH), jnp.float32, -lim1, lim1)
    w2 = jax.random.uniform(k3, (HID_CH, OUT_CH), jnp.float32, -lim2, lim2)
    b2 = jax.random.uniform(k4, (1, OUT_CH), jnp.float32, -lim2, lim2)
    return w1, b1, w2, b2


def make_normalized_adj(key, n):
    """Random undirected graph -> D^{-1/2} (A + I) D^{-1/2} (GCN/APPNP norm)."""
    a = (jax.random.uniform(key, (n, n)) < 0.05).astype(jnp.float32)
    a = jnp.maximum(a, a.T)                       # symmetric
    a = a + jnp.eye(n, dtype=jnp.float32)         # self loops
    deg = jnp.sum(a, axis=1)
    d_inv_sqrt = 1.0 / jnp.sqrt(deg)
    return a * d_inv_sqrt[:, None] * d_inv_sqrt[None, :]


if __name__ == "__main__":
    key = jax.random.PRNGKey(0)
    kx, kadj, kp = jax.random.split(key, 3)

    x = jax.random.normal(kx, (N_NODES, IN_CH), jnp.float32)
    adj = make_normalized_adj(kadj, N_NODES)
    w1, b1, w2, b2 = make_params(kp)

    out = appnp_forward(x, adj, w1, b1, w2, b2)
    out = jax.block_until_ready(out)

    # Sanity vs. pure-JAX reference (same math, f32 throughout).
    h_ref = jnp.maximum(x @ w1 + b1, 0.0)
    z0_ref = h_ref @ w2 + b2
    z_ref = z0_ref
    for _ in range(K_PROP):
        z_ref = (1.0 - ALPHA) * (adj @ z_ref) + ALPHA * z0_ref
    ref = jax.nn.log_softmax(z_ref, axis=1)

    row_sums = jnp.sum(jnp.exp(out), axis=1)
    assert out.shape == (N_NODES, OUT_CH)
    assert jnp.allclose(row_sums, 1.0, atol=1e-4)
    # bf16 matmul inputs in the propagation loop -> loose tolerance vs f32 ref.
    assert jnp.allclose(out, ref, atol=5e-2, rtol=5e-2)

    print("KERNEL_OK")
</pallas_src>

<mosaic_0001>
module attributes {stable_mosaic.version = 11 : i64} {
  func.func @appnp_kernel(%arg0: memref<128x32xf32, #tpu.memory_space<vmem>>, %arg1: memref<128x128xf32, #tpu.memory_space<vmem>>, %arg2: memref<32x128xf32, #tpu.memory_space<vmem>>, %arg3: memref<1x128xf32, #tpu.memory_space<vmem>>, %arg4: memref<128x128xf32, #tpu.memory_space<vmem>>, %arg5: memref<1x128xf32, #tpu.memory_space<vmem>>, %arg6: memref<128x128xf32, #tpu.memory_space<vmem>>) attributes {dimension_semantics = [], scalar_prefetch = 0 : i64, scratch_operands = 0 : i64, tpu.core_type = #tpu.core_type<tc>} {
    %c0 = arith.constant 0 : index
    %c0_0 = arith.constant 0 : index
    %0 = vector.load %arg0[%c0, %c0_0] : memref<128x32xf32, #tpu.memory_space<vmem>>, vector<128x32xf32>
    %c0_1 = arith.constant 0 : index
    %c0_2 = arith.constant 0 : index
    %1 = vector.load %arg2[%c0_1, %c0_2] : memref<32x128xf32, #tpu.memory_space<vmem>>, vector<32x128xf32>
    %cst = arith.constant dense<0.000000e+00> : vector<128x128xf32>
    %2 = tpu.matmul %0, %1, %cst {dimension_numbers = #tpu.dot_dimension_numbers<[1], [0], [0], [1], [0, 0, 1, 1], [], []>} : vector<128x32xf32>, vector<32x128xf32>, vector<128x128xf32> -> vector<128x128xf32>
    %c0_3 = arith.constant 0 : index
    %c0_4 = arith.constant 0 : index
    %3 = vector.load %arg3[%c0_3, %c0_4] : memref<1x128xf32, #tpu.memory_space<vmem>>, vector<1x128xf32>
    %4 = vector.broadcast %3 : vector<1x128xf32> to vector<128x128xf32>
    %5 = arith.addf %2, %4 : vector<128x128xf32>
    %cst_5 = arith.constant 0.000000e+00 : f32
    %6 = vector.broadcast %cst_5 : f32 to vector<128x128xf32>
    %7 = arith.maximumf %5, %6 : vector<128x128xf32>
    %c0_6 = arith.constant 0 : index
    %c0_7 = arith.constant 0 : index
    %8 = vector.load %arg4[%c0_6, %c0_7] : memref<128x128xf32, #tpu.memory_space<vmem>>, vector<128x128xf32>
    %cst_8 = arith.constant dense<0.000000e+00> : vector<128x128xf32>
    %9 = tpu.matmul %7, %8, %cst_8 {dimension_numbers = #tpu.dot_dimension_numbers<[1], [0], [0], [1], [0, 0, 1, 1], [], []>} : vector<128x128xf32>, vector<128x128xf32>, vector<128x128xf32> -> vector<128x128xf32>
    %c0_9 = arith.constant 0 : index
    %c0_10 = arith.constant 0 : index
    %10 = vector.load %arg5[%c0_9, %c0_10] : memref<1x128xf32, #tpu.memory_space<vmem>>, vector<1x128xf32>
    %11 = vector.broadcast %10 : vector<1x128xf32> to vector<128x128xf32>
    %12 = arith.addf %9, %11 : vector<128x128xf32>
    %c0_11 = arith.constant 0 : index
    %c0_12 = arith.constant 0 : index
    %13 = vector.load %arg1[%c0_11, %c0_12] : memref<128x128xf32, #tpu.memory_space<vmem>>, vector<128x128xf32>
    %cst_13 = arith.constant 0.899999976 : f32
    %14 = vector.broadcast %cst_13 : f32 to vector<128x128xf32>
    %15 = arith.mulf %14, %13 : vector<128x128xf32>
    %16 = arith.truncf %15 : vector<128x128xf32> to vector<128x128xbf16>
    %cst_14 = arith.constant 1.000000e-01 : f32
    %17 = vector.broadcast %cst_14 : f32 to vector<128x128xf32>
    %18 = arith.mulf %17, %12 : vector<128x128xf32>
    %c0_i32 = arith.constant 0 : i32
    %19 = arith.truncf %12 : vector<128x128xf32> to vector<128x128xbf16>
    %cst_15 = arith.constant dense<0.000000e+00> : vector<128x128xf32>
    %20 = tpu.matmul %16, %19, %cst_15 {dimension_numbers = #tpu.dot_dimension_numbers<[1], [0], [0], [1], [0, 0, 1, 1], [], []>} : vector<128x128xbf16>, vector<128x128xbf16>, vector<128x128xf32> -> vector<128x128xf32>
    %21 = arith.addf %20, %18 : vector<128x128xf32>
    %c1_i32 = arith.constant 1 : i32
    %22 = arith.truncf %21 : vector<128x128xf32> to vector<128x128xbf16>
    %cst_16 = arith.constant dense<0.000000e+00> : vector<128x128xf32>
    %23 = tpu.matmul %16, %22, %cst_16 {dimension_numbers = #tpu.dot_dimension_numbers<[1], [0], [0], [1], [0, 0, 1, 1], [], []>} : vector<128x128xbf16>, vector<128x128xbf16>, vector<128x128xf32> -> vector<128x128xf32>
    %24 = arith.addf %23, %18 : vector<128x128xf32>
    %c2_i32 = arith.constant 2 : i32
    %25 = arith.truncf %24 : vector<128x128xf32> to vector<128x128xbf16>
    %cst_17 = arith.constant dense<0.000000e+00> : vector<128x128xf32>
    %26 = tpu.matmul %16, %25, %cst_17 {dimension_numbers = #tpu.dot_dimension_numbers<[1], [0], [0], [1], [0, 0, 1, 1], [], []>} : vector<128x128xbf16>, vector<128x128xbf16>, vector<128x128xf32> -> vector<128x128xf32>
    %27 = arith.addf %26, %18 : vector<128x128xf32>
    %c3_i32 = arith.constant 3 : i32
    %28 = arith.truncf %27 : vector<128x128xf32> to vector<128x128xbf16>
    %cst_18 = arith.constant dense<0.000000e+00> : vector<128x128xf32>
    %29 = tpu.matmul %16, %28, %cst_18 {dimension_numbers = #tpu.dot_dimension_numbers<[1], [0], [0], [1], [0, 0, 1, 1], [], []>} : vector<128x128xbf16>, vector<128x128xbf16>, vector<128x128xf32> -> vector<128x128xf32>
    %30 = arith.addf %29, %18 : vector<128x128xf32>
    %c4_i32 = arith.constant 4 : i32
    %31 = arith.truncf %30 : vector<128x128xf32> to vector<128x128xbf16>
    %cst_19 = arith.constant dense<0.000000e+00> : vector<128x128xf32>
    %32 = tpu.matmul %16, %31, %cst_19 {dimension_numbers = #tpu.dot_dimension_numbers<[1], [0], [0], [1], [0, 0, 1, 1], [], []>} : vector<128x128xbf16>, vector<128x128xbf16>, vector<128x128xf32> -> vector<128x128xf32>
    %33 = arith.addf %32, %18 : vector<128x128xf32>
    %c5_i32 = arith.constant 5 : i32
    %34 = arith.truncf %33 : vector<128x128xf32> to vector<128x128xbf16>
    %cst_20 = arith.constant dense<0.000000e+00> : vector<128x128xf32>
    %35 = tpu.matmul %16, %34, %cst_20 {dimension_numbers = #tpu.dot_dimension_numbers<[1], [0], [0], [1], [0, 0, 1, 1], [], []>} : vector<128x128xbf16>, vector<128x128xbf16>, vector<128x128xf32> -> vector<128x128xf32>
    %36 = arith.addf %35, %18 : vector<128x128xf32>
    %c6_i32 = arith.constant 6 : i32
    %37 = arith.truncf %36 : vector<128x128xf32> to vector<128x128xbf16>
    %cst_21 = arith.constant dense<0.000000e+00> : vector<128x128xf32>
    %38 = tpu.matmul %16, %37, %cst_21 {dimension_numbers = #tpu.dot_dimension_numbers<[1], [0], [0], [1], [0, 0, 1, 1], [], []>} : vector<128x128xbf16>, vector<128x128xbf16>, vector<128x128xf32> -> vector<128x128xf32>
    %39 = arith.addf %38, %18 : vector<128x128xf32>
    %c7_i32 = arith.constant 7 : i32
    %40 = arith.truncf %39 : vector<128x128xf32> to vector<128x128xbf16>
    %cst_22 = arith.constant dense<0.000000e+00> : vector<128x128xf32>
    %41 = tpu.matmul %16, %40, %cst_22 {dimension_numbers = #tpu.dot_dimension_numbers<[1], [0], [0], [1], [0, 0, 1, 1], [], []>} : vector<128x128xbf16>, vector<128x128xbf16>, vector<128x128xf32> -> vector<128x128xf32>
    %42 = arith.addf %41, %18 : vector<128x128xf32>
    %c8_i32 = arith.constant 8 : i32
    %43 = arith.truncf %42 : vector<128x128xf32> to vector<128x128xbf16>
    %cst_23 = arith.constant dense<0.000000e+00> : vector<128x128xf32>
    %44 = tpu.matmul %16, %43, %cst_23 {dimension_numbers = #tpu.dot_dimension_numbers<[1], [0], [0], [1], [0, 0, 1, 1], [], []>} : vector<128x128xbf16>, vector<128x128xbf16>, vector<128x128xf32> -> vector<128x128xf32>
    %45 = arith.addf %44, %18 : vector<128x128xf32>
    %c9_i32 = arith.constant 9 : i32
    %46 = arith.truncf %45 : vector<128x128xf32> to vector<128x128xbf16>
    %cst_24 = arith.constant dense<0.000000e+00> : vector<128x128xf32>
    %47 = tpu.matmul %16, %46, %cst_24 {dimension_numbers = #tpu.dot_dimension_numbers<[1], [0], [0], [1], [0, 0, 1, 1], [], []>} : vector<128x128xbf16>, vector<128x128xbf16>, vector<128x128xf32> -> vector<128x128xf32>
    %48 = arith.addf %47, %18 : vector<128x128xf32>
    %49 = tpu.iota {dimensions = array<i32: 1>} : vector<128x128xi32>
    %c16_i32 = arith.constant 16 : i32
    %50 = vector.broadcast %c16_i32 : i32 to vector<128x128xi32>
    %51 = arith.cmpi slt, %49, %50 : vector<128x128xi32>
    %cst_25 = arith.constant -1.000000e+30 : f32
    %52 = vector.broadcast %cst_25 : f32 to vector<128x128xf32>
    %53 = arith.select %51, %48, %52 : vector<128x128xi1>, vector<128x128xf32>
    %cst_26 = arith.constant dense<0xFF800000> : vector<128xf32>
    %54 = vector.multi_reduction <maximumf>, %53, %cst_26 [1] : vector<128x128xf32> to vector<128xf32>
    %55 = vector.shape_cast %54 : vector<128xf32> to vector<128x1xf32>
    %56 = vector.broadcast %55 : vector<128x1xf32> to vector<128x128xf32>
    %57 = arith.subf %53, %56 : vector<128x128xf32>
    %58 = math.exp %57 : vector<128x128xf32>
    %cst_27 = arith.constant dense<0.000000e+00> : vector<128xf32>
    %59 = vector.multi_reduction <add>, %58, %cst_27 [1] : vector<128x128xf32> to vector<128xf32>
    %60 = vector.shape_cast %59 : vector<128xf32> to vector<128x1xf32>
    %61 = math.log %60 : vector<128x1xf32>
    %62 = arith.addf %61, %55 : vector<128x1xf32>
    %63 = vector.broadcast %62 : vector<128x1xf32> to vector<128x128xf32>
    %64 = arith.subf %48, %63 : vector<128x128xf32>
    %c0_28 = arith.constant 0 : index
    %c0_29 = arith.constant 0 : index
    %65 = vector.load %arg6[%c0_28, %c0_29] : memref<128x128xf32, #tpu.memory_space<vmem>>, vector<128x128xf32>
    tpu.vector_store %arg6[%c0_28, %c0_29], %64 {strides = array<i32>} : memref<128x128xf32, #tpu.memory_space<vmem>>, vector<128x128xf32>,
    return
  }
}

</mosaic_0001>

<llo_original>
// kernel: tpu_custom_call.1
$region0: #{tpu_custom_call.1}
  #allocation0 [shape = 'u32[]', space=smem, size = 0x4, offset = 0x4, fixed_abs, tag = 'smem constant byte address 0x4 - core index']
  #allocation1 [shape = 'u32[144,128]{1,0:T(1,128)}', space=vmem, size = 0x12000, scoped, tag = 'internal scratch']
  %s0 = inlined_call_operand.vmem [shape: f32[128,32], index: 0, kind: input, shape index: {}]
  %s1 = inlined_call_operand.vmem [shape: f32[128,128], index: 1, kind: input, shape index: {}]
  %s2 = inlined_call_operand.vmem [shape: f32[32,128], index: 2, kind: input, shape index: {}]
  %s3 = inlined_call_operand.vmem [shape: f32[1,128], index: 3, kind: input, shape index: {}]
  %s4 = inlined_call_operand.hbm [shape: f32[128,128], index: 4, kind: input, shape index: {}]
  %s5 = inlined_call_operand.vmem [shape: f32[1,128], index: 5, kind: input, shape index: {}]
  %s6 = inlined_call_operand.hbm [shape: f32[128,128], index: 6, kind: output, shape index: {}]
  %s7 = sld [smem:[#allocation0]]
  $region38: #{tpu_custom_call.1} parent=0
    _
  %s9 = ssub.s32 1, %s7
  %s10 = scalar_select 0, %s9, %s7
  $region1: #{tpu_custom_call.1} parent=0
    #allocation2 [shape = 'u8[65536]{0}', space=vmem, size = 0x10000, scoped, tag = 'input window, operand 4, single buffered']
    #allocation3 [shape = 's32[1]{0}', space=sflag, size = 0x4, scoped, tag = 'scoped memory for tpu_custom_call.1']
    #allocation4 [shape = 's32[1]{0}', space=sflag, size = 0x4, scoped, tag = 'scoped memory for tpu_custom_call.1']
    #allocation5 [shape = 'u8[65536]{0}', space=vmem, size = 0x10000, scoped, tag = 'output window, operand 0, single buffered']
    %11 = vsyncpa [#allocation3], 0
    %12 = vsyncpa [#allocation4], 0
    // Predicated region
    $region2: #{tpu_custom_call.1} parent=1 // pred_check
      _
    $region3: #{tpu_custom_call.1} parent=1 // pred_check_branch
      %14 = sbr.rel (0) target = $region5
    $region4: #{tpu_custom_call.1} parent=1 // pred_region
      _
    $region5: #{tpu_custom_call.1} parent=1 // pred_fallthru
      _
    // Predicated region
    $region6: #{tpu_custom_call.1} parent=1 // pred_check
      _
    $region7: #{tpu_custom_call.1} parent=1 // pred_check_branch
      %16 = sbr.rel (0) target = $region9
    $region8: #{tpu_custom_call.1} parent=1 // pred_region
      _
    $region9: #{tpu_custom_call.1} parent=1 // pred_fallthru
      _
    // Predicated region
    $region10: #{tpu_custom_call.1} parent=1 // pred_check
      _
    $region11: #{tpu_custom_call.1} parent=1 // pred_check_branch
      %18 = sbr.rel (0) target = $region13
    $region12: #{tpu_custom_call.1} parent=1 // pred_region
      _
    $region13: #{tpu_custom_call.1} parent=1 // pred_fallthru
      _
    // Predicated region
    $region14: #{tpu_custom_call.1} parent=1 // pred_check
      _
    $region15: #{tpu_custom_call.1} parent=1 // pred_check_branch
      %20 = sbr.rel (0) target = $region17
    $region16: #{tpu_custom_call.1} parent=1 // pred_region
      _
    $region17: #{tpu_custom_call.1} parent=1 // pred_fallthru
      _
    // Predicated region
    $region18: #{tpu_custom_call.1} parent=1 // pred_check
      _
    $region19: #{tpu_custom_call.1} parent=1 // pred_check_branch
      %22 = sbr.rel (0) target = $region21
    $region20: #{tpu_custom_call.1} parent=1 // pred_region
      %s24 = ssub.s32 2048, 2048
      %25 = vsyncadd [#allocation3], %s24
      %s26 = sshll.u32 [#allocation2], 4
      %s27 = int_to_ptr.vmem [resolvable:$true] %s26
      %32 = dma.hbm_to_vmem [thread:$0]  %s4, 2048, %s27, [#allocation3], 128, 128, 8
    $region21: #{tpu_custom_call.1} parent=1 // pred_fallthru
      _
    // Predicated region
    $region22: #{tpu_custom_call.1} parent=1 // pred_check
      _
    $region23: #{tpu_custom_call.1} parent=1 // pred_check_branch
      %34 = sbr.rel (0) target = $region25
    $region24: #{tpu_custom_call.1} parent=1 // pred_region
      _
    $region25: #{tpu_custom_call.1} parent=1 // pred_fallthru
      _
    // Predicated region
    $region26: #{tpu_custom_call.1} parent=1 // pred_check
      _
    $region27: #{tpu_custom_call.1} parent=1 // pred_check_branch
      %36 = sbr.rel (0) target = $region29
    $region28: #{tpu_custom_call.1} parent=1 // pred_region
      %37 = dma.done [#allocation3], 2048
    $region29: #{tpu_custom_call.1} parent=1 // pred_fallthru
      _
    %v39 = vld [vmem:[%s0] sm:$0xff]
    %v40 = vld [vmem:[%s0 + $0x8] sm:$0xff]
    %v41 = vld [vmem:[%s0 + $0x10] sm:$0xff]
    %v42 = vld [vmem:[%s0 + $0x18] sm:$0xff]
    %v43 = vld [vmem:[%s0 + $0x20] sm:$0xff]
    %v44 = vld [vmem:[%s0 + $0x28] sm:$0xff]
    %v45 = vld [vmem:[%s0 + $0x30] sm:$0xff]
    %v46 = vld [vmem:[%s0 + $0x38] sm:$0xff]
    %v47 = vld [vmem:[%s0 + $0x40] sm:$0xff]
    %v48 = vld [vmem:[%s0 + $0x48] sm:$0xff]
    %v49 = vld [vmem:[%s0 + $0x50] sm:$0xff]
    %v50 = vld [vmem:[%s0 + $0x58] sm:$0xff]
    %v51 = vld [vmem:[%s0 + $0x60] sm:$0xff]
    %v52 = vld [vmem:[%s0 + $0x68] sm:$0xff]
    %v53 = vld [vmem:[%s0 + $0x70] sm:$0xff]
    %v54 = vld [vmem:[%s0 + $0x78] sm:$0xff]
    %v55 = vld [vmem:[%s2] sm:$0xff]
    %v56 = vld [vmem:[%s2 + $0x8] sm:$0xff]
    %v57 = vld [vmem:[%s2 + $0x10] sm:$0xff]
    %v58 = vld [vmem:[%s2 + $0x18] sm:$0xff]
    %v59 = vld [vmem:[%s3] sm:$0x1]
    %v61 = vlaneseq
    %v62 = vshrl.u32 %v61, 7
    %v63 = vsub.s32 0, %v62
    %v64 = vrot.slane %v59, %v63
    %vm66 = vcmask 261120
    %v68 = vsel %vm66, %v39, 0
    %v71 = vsel %vm66, %v40, 0
    %v74 = vsel %vm66, %v41, 0
    %v77 = vsel %vm66, %v42, 0
    %v80 = vsel %vm66, %v43, 0
    %v83 = vsel %vm66, %v44, 0
    %v86 = vsel %vm66, %v45, 0
    %v89 = vsel %vm66, %v46, 0
    %v92 = vsel %vm66, %v47, 0
    %v95 = vsel %vm66, %v48, 0
    %v98 = vsel %vm66, %v49, 0
    %v101 = vsel %vm66, %v50, 0
    %v104 = vsel %vm66, %v51, 0
    %v107 = vsel %vm66, %v52, 0
    %v110 = vsel %vm66, %v53, 0
    %v113 = vsel %vm66, %v54, 0
    %115 = vmatprep.subr.mxu0 0.0
    %116 = vmatpush1.msra.mxu0 0.0
    %117 = vmatprep.subr.mxu0 0.0
    %118 = vmatpush1.msra.mxu0 0.0
    %119 = vmatprep.subr.mxu0 0.0
    %120 = vmatpush1.msra.mxu0 0.0
    %121 = vmatprep.subr.mxu0 0.0
    %122 = vmatpush1.msra.mxu0 0.0
    %123 = vmatprep.subr.mxu0 0.0
    %124 = vmatpush1.msra.mxu0 0.0
    %125 = vmatprep.subr.mxu0 0.0
    %126 = vmatpush1.msra.mxu0 0.0
    %127 = vmatprep.subr.mxu0 0.0
    %128 = vmatpush1.msra.mxu0 0.0
    %129 = vmatprep.subr.mxu0 0.0
    %130 = vmatpush1.msra.mxu0 0.0
    %131 = vmatprep.subr.mxu0 0.0
    %132 = vmatpush1.msra.mxu0 0.0
    %133 = vmatprep.subr.mxu0 0.0
    %134 = vmatpush1.msra.mxu0 0.0
    %135 = vmatprep.subr.mxu0 0.0
    %136 = vmatpush1.msra.mxu0 0.0
    %137 = vmatprep.subr.mxu0 0.0
    %138 = vmatpush1.msra.mxu0 0.0
    %139 = vmatprep.subr.mxu0 0.0
    %140 = vmatpush1.msra.mxu0 %v58
    %141 = vmatprep.subr.mxu0 0.0
    %142 = vmatpush1.msra.mxu0 %v57
    %143 = vmatprep.subr.mxu0 0.0
    %144 = vmatpush1.msra.mxu0 %v56
    %145 = vmatprep.subr.mxu0 0.0
    %146 = vmatpush1.msra.mxu0 %v55
    %147 = vmatprep.subr.mxu0 0.0
    %148 = vmatpush2.msra.mxu0 0.0
    %149 = vmatprep.subr.mxu0 0.0
    %150 = vmatpush2.msra.mxu0 0.0
    %151 = vmatprep.subr.mxu0 0.0
    %152 = vmatpush2.msra.mxu0 0.0
    %153 = vmatprep.subr.mxu0 0.0
    %154 = vmatpush2.msra.mxu0 0.0
    %155 = vmatprep.subr.mxu0 0.0
    %156 = vmatpush2.msra.mxu0 0.0
    %157 = vmatprep.subr.mxu0 0.0
    %158 = vmatpush2.msra.mxu0 0.0
    %159 = vmatprep.subr.mxu0 0.0
    %160 = vmatpush2.msra.mxu0 0.0
    %161 = vmatprep.subr.mxu0 0.0
    %162 = vmatpush2.msra.mxu0 0.0
    %163 = vmatprep.subr.mxu0 0.0
    %164 = vmatpush2.msra.mxu0 0.0
    %165 = vmatprep.subr.mxu0 0.0
    %166 = vmatpush2.msra.mxu0 0.0
    %167 = vmatprep.subr.mxu0 0.0
    %168 = vmatpush2.msra.mxu0 0.0
    %169 = vmatprep.subr.mxu0 0.0
    %170 = vmatpush2.msra.mxu0 0.0
    %171 = vmatprep.subr.mxu0 0.0
    %172 = vmatpush2.msra.mxu0 0.0
    %173 = vmatprep.subr.mxu0 0.0
    %174 = vmatpush2.msra.mxu0 0.0
    %175 = vmatprep.subr.mxu0 0.0
    %176 = vmatpush2.msra.mxu0 0.0
    %177 = vmatprep.subr.mxu0 0.0
    %178 = vmatpush2.msra.mxu0 0.0
    %179 = vmatprep.mubr.f32.mxu0 0.0
    %180 = vmatmul.mubr.f32.gmra.mxu0 %v68
    %v181 = vpop.f32.mrf.mxu0
    %v182 = vadd.f32 %v64, %v181
    %v183 = vpop.f32.mrf.mxu0
    %184 = vmatprep.mubr.f32.mxu0 0.0
    %185 = vmatmul.mubr.f32.gmra.mxu0 %v71
    %v186 = vpop.f32.mrf.mxu0
    %v187 = vadd.f32 %v64, %v186
    %v188 = vpop.f32.mrf.mxu0
    %189 = vmatprep.mubr.f32.mxu0 0.0
    %190 = vmatmul.mubr.f32.gmra.mxu0 %v74
    %v191 = vpop.f32.mrf.mxu0
    %v192 = vadd.f32 %v64, %v191
    %v193 = vpop.f32.mrf.mxu0
    %194 = vmatprep.mubr.f32.mxu0 0.0
    %195 = vmatmul.mubr.f32.gmra.mxu0 %v77
    %v196 = vpop.f32.mrf.mxu0
    %v197 = vadd.f32 %v64, %v196
    %v198 = vpop.f32.mrf.mxu0
    %199 = vmatprep.mubr.f32.mxu0 0.0
    %200 = vmatmul.mubr.f32.gmra.mxu0 %v80
    %v201 = vpop.f32.mrf.mxu0
    %v202 = vadd.f32 %v64, %v201
    %v203 = vpop.f32.mrf.mxu0
    %204 = vmatprep.mubr.f32.mxu0 0.0
    %205 = vmatmul.mubr.f32.gmra.mxu0 %v83
    %v206 = vpop.f32.mrf.mxu0
    %v207 = vadd.f32 %v64, %v206
    %v208 = vpop.f32.mrf.mxu0
    %209 = vmatprep.mubr.f32.mxu0 0.0
    %210 = vmatmul.mubr.f32.gmra.mxu0 %v86
    %v211 = vpop.f32.mrf.mxu0
    %v212 = vadd.f32 %v64, %v211
    %v213 = vpop.f32.mrf.mxu0
    %214 = vmatprep.mubr.f32.mxu0 0.0
    %215 = vmatmul.mubr.f32.gmra.mxu0 %v89
    %v216 = vpop.f32.mrf.mxu0
    %v217 = vadd.f32 %v64, %v216
    %v218 = vpop.f32.mrf.mxu0
    %219 = vmatprep.mubr.f32.mxu0 0.0
    %220 = vmatmul.mubr.f32.gmra.mxu0 %v92
    %v221 = vpop.f32.mrf.mxu0
    %v222 = vadd.f32 %v64, %v221
    %v223 = vpop.f32.mrf.mxu0
    %224 = vmatprep.mubr.f32.mxu0 0.0
    %225 = vmatmul.mubr.f32.gmra.mxu0 %v95
    %v226 = vpop.f32.mrf.mxu0
    %v227 = vadd.f32 %v64, %v226
    %v228 = vpop.f32.mrf.mxu0
    %229 = vmatprep.mubr.f32.mxu0 0.0
    %230 = vmatmul.mubr.f32.gmra.mxu0 %v98
    %v231 = vpop.f32.mrf.mxu0
    %v232 = vadd.f32 %v64, %v231
    %v233 = vpop.f32.mrf.mxu0
    %234 = vmatprep.mubr.f32.mxu0 0.0
    %235 = vmatmul.mubr.f32.gmra.mxu0 %v101
    %v236 = vpop.f32.mrf.mxu0
    %v237 = vadd.f32 %v64, %v236
    %v238 = vpop.f32.mrf.mxu0
    %239 = vmatprep.mubr.f32.mxu0 0.0
    %240 = vmatmul.mubr.f32.gmra.mxu0 %v104
    %v241 = vpop.f32.mrf.mxu0
    %v242 = vadd.f32 %v64, %v241
    %v243 = vpop.f32.mrf.mxu0
    %244 = vmatprep.mubr.f32.mxu0 0.0
    %245 = vmatmul.mubr.f32.gmra.mxu0 %v107
    %v246 = vpop.f32.mrf.mxu0
    %v247 = vadd.f32 %v64, %v246
    %v248 = vpop.f32.mrf.mxu0
    %249 = vmatprep.mubr.f32.mxu0 0.0
    %250 = vmatmul.mubr.f32.gmra.mxu0 %v110
    %v251 = vpop.f32.mrf.mxu0
    %v252 = vadd.f32 %v64, %v251
    %v253 = vpop.f32.mrf.mxu0
    %254 = vmatprep.mubr.f32.mxu0 0.0
    %255 = vmatmul.mubr.f32.gmra.mxu0 %v113
    %v256 = vpop.f32.mrf.mxu0
    %v257 = vadd.f32 %v64, %v256
    %v258 = vpop.f32.mrf.mxu0
    %259 = vdwg.mxu0
    %v260 = vmax.f32 %v182, 0.0
    %v261 = vmax.f32 %v187, 0.0
    %v262 = vmax.f32 %v192, 0.0
    %v263 = vmax.f32 %v197, 0.0
    %v264 = vmax.f32 %v202, 0.0
    %v265 = vmax.f32 %v207, 0.0
    %v266 = vmax.f32 %v212, 0.0
    %v267 = vmax.f32 %v217, 0.0
    %v268 = vmax.f32 %v222, 0.0
    %v269 = vmax.f32 %v227, 0.0
    %v270 = vmax.f32 %v232, 0.0
    %v271 = vmax.f32 %v237, 0.0
    %v272 = vmax.f32 %v242, 0.0
    %v273 = vmax.f32 %v247, 0.0
    %v274 = vmax.f32 %v252, 0.0
    %v275 = vmax.f32 %v257, 0.0
    %v276 = vld [vmem:[#allocation2] sm:$0xff]
    %v277 = vld [vmem:[#allocation2 + $0x8] sm:$0xff]
    %v278 = vld [vmem:[#allocation2 + $0x10] sm:$0xff]
    %v279 = vld [vmem:[#allocation2 + $0x18] sm:$0xff]
    %v280 = vld [vmem:[#allocation2 + $0x20] sm:$0xff]
    %v281 = vld [vmem:[#allocation2 + $0x28] sm:$0xff]
    %v282 = vld [vmem:[#allocation2 + $0x30] sm:$0xff]
    %v283 = vld [vmem:[#allocation2 + $0x38] sm:$0xff]
    %v284 = vld [vmem:[#allocation2 + $0x40] sm:$0xff]
    %v285 = vld [vmem:[#allocation2 + $0x48] sm:$0xff]
    %v286 = vld [vmem:[#allocation2 + $0x50] sm:$0xff]
    %v287 = vld [vmem:[#allocation2 + $0x58] sm:$0xff]
    %v288 = vld [vmem:[#allocation2 + $0x60] sm:$0xff]
    %v289 = vld [vmem:[#allocation2 + $0x68] sm:$0xff]
    %v290 = vld [vmem:[#allocation2 + $0x70] sm:$0xff]
    %v291 = vld [vmem:[#allocation2 + $0x78] sm:$0xff]
    %v292 = vld [vmem:[%s5] sm:$0x1]
    %v294 = vlaneseq
    %v295 = vshrl.u32 %v294, 7
    %v296 = vsub.s32 0, %v295
    %v297 = vrot.slane %v292, %v296
    %299 = vmatprep.subr.mxu0 0.0
    %300 = vmatpush1.msra.mxu0 %v291
    %301 = vmatprep.subr.mxu0 0.0
    %302 = vmatpush1.msra.mxu0 %v290
    %303 = vmatprep.subr.mxu0 0.0
    %304 = vmatpush1.msra.mxu0 %v289
    %305 = vmatprep.subr.mxu0 0.0
    %306 = vmatpush1.msra.mxu0 %v288
    %307 = vmatprep.subr.mxu0 0.0
    %308 = vmatpush1.msra.mxu0 %v287
    %309 = vmatprep.subr.mxu0 0.0
    %310 = vmatpush1.msra.mxu0 %v286
    %311 = vmatprep.subr.mxu0 0.0
    %312 = vmatpush1.msra.mxu0 %v285
    %313 = vmatprep.subr.mxu0 0.0
    %314 = vmatpush1.msra.mxu0 %v284
    %315 = vmatprep.subr.mxu0 0.0
    %316 = vmatpush1.msra.mxu0 %v283
    %317 = vmatprep.subr.mxu0 0.0
    %318 = vmatpush1.msra.mxu0 %v282
    %319 = vmatprep.subr.mxu0 0.0
    %320 = vmatpush1.msra.mxu0 %v281
    %321 = vmatprep.subr.mxu0 0.0
    %322 = vmatpush1.msra.mxu0 %v280
    %323 = vmatprep.subr.mxu0 0.0
    %324 = vmatpush1.msra.mxu0 %v279
    %325 = vmatprep.subr.mxu0 0.0
    %326 = vmatpush1.msra.mxu0 %v278
    %327 = vmatprep.subr.mxu0 0.0
    %328 = vmatpush1.msra.mxu0 %v277
    %329 = vmatprep.subr.mxu0 0.0
    %330 = vmatpush1.msra.mxu0 %v276
    %331 = vmatprep.subr.mxu0 0.0
    %332 = vmatpush2.msra.mxu0 0.0
    %333 = vmatprep.subr.mxu0 0.0
    %334 = vmatpush2.msra.mxu0 0.0
    %335 = vmatprep.subr.mxu0 0.0
    %336 = vmatpush2.msra.mxu0 0.0
    %337 = vmatprep.subr.mxu0 0.0
    %338 = vmatpush2.msra.mxu0 0.0
    %339 = vmatprep.subr.mxu0 0.0
    %340 = vmatpush2.msra.mxu0 0.0
    %341 = vmatprep.subr.mxu0 0.0
    %342 = vmatpush2.msra.mxu0 0.0
    %343 = vmatprep.subr.mxu0 0.0
    %344 = vmatpush2.msra.mxu0 0.0
    %345 = vmatprep.subr.mxu0 0.0
    %346 = vmatpush2.msra.mxu0 0.0
    %347 = vmatprep.subr.mxu0 0.0
    %348 = vmatpush2.msra.mxu0 0.0
    %349 = vmatprep.subr.mxu0 0.0
    %350 = vmatpush2.msra.mxu0 0.0
    %351 = vmatprep.subr.mxu0 0.0
    %352 = vmatpush2.msra.mxu0 0.0
    %353 = vmatprep.subr.mxu0 0.0
    %354 = vmatpush2.msra.mxu0 0.0
    %355 = vmatprep.subr.mxu0 0.0
    %356 = vmatpush2.msra.mxu0 0.0
    %357 = vmatprep.subr.mxu0 0.0
    %358 = vmatpush2.msra.mxu0 0.0
    %359 = vmatprep.subr.mxu0 0.0
    %360 = vmatpush2.msra.mxu0 0.0
    %361 = vmatprep.subr.mxu0 0.0
    %362 = vmatpush2.msra.mxu0 0.0
    %363 = vmatprep.mubr.f32.mxu0 0.0
    %364 = vmatmul.mubr.f32.gmra.mxu0 %v260
    %v365 = vpop.f32.mrf.mxu0
    %v366 = vadd.f32 %v297, %v365
    %v367 = vpop.f32.mrf.mxu0
    %368 = vmatprep.mubr.f32.mxu0 0.0
    %369 = vmatmul.mubr.f32.gmra.mxu0 %v261
    %v370 = vpop.f32.mrf.mxu0
    %v371 = vadd.f32 %v297, %v370
    %v372 = vpop.f32.mrf.mxu0
    %373 = vmatprep.mubr.f32.mxu0 0.0
    %374 = vmatmul.mubr.f32.gmra.mxu0 %v262
    %v375 = vpop.f32.mrf.mxu0
    %v376 = vadd.f32 %v297, %v375
    %v377 = vpop.f32.mrf.mxu0
    %378 = vmatprep.mubr.f32.mxu0 0.0
    %379 = vmatmul.mubr.f32.gmra.mxu0 %v263
    %v380 = vpop.f32.mrf.mxu0
    %v381 = vadd.f32 %v297, %v380
    %v382 = vpop.f32.mrf.mxu0
    %383 = vmatprep.mubr.f32.mxu0 0.0
    %384 = vmatmul.mubr.f32.gmra.mxu0 %v264
    %v385 = vpop.f32.mrf.mxu0
    %v386 = vadd.f32 %v297, %v385
    %v387 = vpop.f32.mrf.mxu0
    %388 = vmatprep.mubr.f32.mxu0 0.0
    %389 = vmatmul.mubr.f32.gmra.mxu0 %v265
    %v390 = vpop.f32.mrf.mxu0
    %v391 = vadd.f32 %v297, %v390
    %v392 = vpop.f32.mrf.mxu0
    %393 = vmatprep.mubr.f32.mxu0 0.0
    %394 = vmatmul.mubr.f32.gmra.mxu0 %v266
    %v395 = vpop.f32.mrf.mxu0
    %v396 = vadd.f32 %v297, %v395
    %v397 = vpop.f32.mrf.mxu0
    %398 = vmatprep.mubr.f32.mxu0 0.0
    %399 = vmatmul.mubr.f32.gmra.mxu0 %v267
    %v400 = vpop.f32.mrf.mxu0
    %v401 = vadd.f32 %v297, %v400
    %v402 = vpop.f32.mrf.mxu0
    %403 = vmatprep.mubr.f32.mxu0 0.0
    %404 = vmatmul.mubr.f32.gmra.mxu0 %v268
    %v405 = vpop.f32.mrf.mxu0
    %v406 = vadd.f32 %v297, %v405
    %v407 = vpop.f32.mrf.mxu0
    %408 = vmatprep.mubr.f32.mxu0 0.0
    %409 = vmatmul.mubr.f32.gmra.mxu0 %v269
    %v410 = vpop.f32.mrf.mxu0
    %v411 = vadd.f32 %v297, %v410
    %v412 = vpop.f32.mrf.mxu0
    %413 = vmatprep.mubr.f32.mxu0 0.0
    %414 = vmatmul.mubr.f32.gmra.mxu0 %v270
    %v415 = vpop.f32.mrf.mxu0
    %v416 = vadd.f32 %v297, %v415
    %v417 = vpop.f32.mrf.mxu0
    %418 = vmatprep.mubr.f32.mxu0 0.0
    %419 = vmatmul.mubr.f32.gmra.mxu0 %v271
    %v420 = vpop.f32.mrf.mxu0
    %v421 = vadd.f32 %v297, %v420
    %v422 = vpop.f32.mrf.mxu0
    %423 = vmatprep.mubr.f32.mxu0 0.0
    %424 = vmatmul.mubr.f32.gmra.mxu0 %v272
    %v425 = vpop.f32.mrf.mxu0
    %v426 = vadd.f32 %v297, %v425
    %v427 = vpop.f32.mrf.mxu0
    %428 = vmatprep.mubr.f32.mxu0 0.0
    %429 = vmatmul.mubr.f32.gmra.mxu0 %v273
    %v430 = vpop.f32.mrf.mxu0
    %v431 = vadd.f32 %v297, %v430
    %v432 = vpop.f32.mrf.mxu0
    %433 = vmatprep.mubr.f32.mxu0 0.0
    %434 = vmatmul.mubr.f32.gmra.mxu0 %v274
    %v435 = vpop.f32.mrf.mxu0
    %v436 = vadd.f32 %v297, %v435
    %v437 = vpop.f32.mrf.mxu0
    %438 = vmatprep.mubr.f32.mxu0 0.0
    %439 = vmatmul.mubr.f32.gmra.mxu0 %v275
    %v440 = vpop.f32.mrf.mxu0
    %v441 = vadd.f32 %v297, %v440
    %v442 = vpop.f32.mrf.mxu0
    %443 = vdwg.mxu0
    %v444 = vld [vmem:[%s1] sm:$0xff]
    %v445 = vld [vmem:[%s1 + $0x8] sm:$0xff]
    %v446 = vld [vmem:[%s1 + $0x10] sm:$0xff]
    %v447 = vld [vmem:[%s1 + $0x18] sm:$0xff]
    %v448 = vld [vmem:[%s1 + $0x20] sm:$0xff]
    %v449 = vld [vmem:[%s1 + $0x28] sm:$0xff]
    %v450 = vld [vmem:[%s1 + $0x30] sm:$0xff]
    %v451 = vld [vmem:[%s1 + $0x38] sm:$0xff]
    %v452 = vld [vmem:[%s1 + $0x40] sm:$0xff]
    %v453 = vld [vmem:[%s1 + $0x48] sm:$0xff]
    %v454 = vld [vmem:[%s1 + $0x50] sm:$0xff]
    %v455 = vld [vmem:[%s1 + $0x58] sm:$0xff]
    %v456 = vld [vmem:[%s1 + $0x60] sm:$0xff]
    %v457 = vld [vmem:[%s1 + $0x68] sm:$0xff]
    %v458 = vld [vmem:[%s1 + $0x70] sm:$0xff]
    %v459 = vld [vmem:[%s1 + $0x78] sm:$0xff]
    %v460 = vmul.f32 %v444, 0.9
    %v461 = vmul.f32 %v445, 0.9
    %v462 = vmul.f32 %v446, 0.9
    %v463 = vmul.f32 %v447, 0.9
    %v464 = vmul.f32 %v448, 0.9
    %v465 = vmul.f32 %v449, 0.9
    %v466 = vmul.f32 %v450, 0.9
    %v467 = vmul.f32 %v451, 0.9
    %v468 = vmul.f32 %v452, 0.9
    %v469 = vmul.f32 %v453, 0.9
    %v470 = vmul.f32 %v454, 0.9
    %v471 = vmul.f32 %v455, 0.9
    %v472 = vmul.f32 %v456, 0.9
    %v473 = vmul.f32 %v457, 0.9
    %v474 = vmul.f32 %v458, 0.9
    %v475 = vmul.f32 %v459, 0.9
    %v476 = vpack.c.bf16 %v461, %v460
    %v477 = vpack.c.bf16 %v463, %v462
    %v478 = vpack.c.bf16 %v465, %v464
    %v479 = vpack.c.bf16 %v467, %v466
    %v480 = vpack.c.bf16 %v469, %v468
    %v481 = vpack.c.bf16 %v471, %v470
    %v482 = vpack.c.bf16 %v473, %v472
    %v483 = vpack.c.bf16 %v475, %v474
    %v484 = vmul.f32 %v366, 0.1
    %v485 = vmul.f32 %v371, 0.1
    %v486 = vmul.f32 %v376, 0.1
    %v487 = vmul.f32 %v381, 0.1
    %v488 = vmul.f32 %v386, 0.1
    %v489 = vmul.f32 %v391, 0.1
    %v490 = vmul.f32 %v396, 0.1
    %v491 = vmul.f32 %v401, 0.1
    %v492 = vmul.f32 %v406, 0.1
    %v493 = vmul.f32 %v411, 0.1
    %v494 = vmul.f32 %v416, 0.1
    %v495 = vmul.f32 %v421, 0.1
    %v496 = vmul.f32 %v426, 0.1
    %v497 = vmul.f32 %v431, 0.1
    %v498 = vmul.f32 %v436, 0.1
    %v499 = vmul.f32 %v441, 0.1
    %v500 = vpack.c.bf16 %v371, %v366
    %v501 = vpack.c.bf16 %v381, %v376
    %v502 = vpack.c.bf16 %v391, %v386
    %v503 = vpack.c.bf16 %v401, %v396
    %v504 = vpack.c.bf16 %v411, %v406
    %v505 = vpack.c.bf16 %v421, %v416
    %v506 = vpack.c.bf16 %v431, %v426
    %v507 = vpack.c.bf16 %v441, %v436
    %508 = vmatprep.subr.bf16.mxu0 0
    %509 = vmatpush1.bf16.msra.mxu0 %v507
    %510 = vmatprep.subr.bf16.mxu0 0
    %511 = vmatpush1.bf16.msra.mxu0 %v506
    %512 = vmatprep.subr.bf16.mxu0 0
    %513 = vmatpush1.bf16.msra.mxu0 %v505
    %514 = vmatprep.subr.bf16.mxu0 0
    %515 = vmatpush1.bf16.msra.mxu0 %v504
    %516 = vmatprep.subr.bf16.mxu0 0
    %517 = vmatpush1.bf16.msra.mxu0 %v503
    %518 = vmatprep.subr.bf16.mxu0 0
    %519 = vmatpush1.bf16.msra.mxu0 %v502
    %520 = vmatprep.subr.bf16.mxu0 0
    %521 = vmatpush1.bf16.msra.mxu0 %v501
    %522 = vmatprep.subr.bf16.mxu0 0
    %523 = vmatpush1.bf16.msra.mxu0 %v500
    %524 = vmatprep.subr.bf16.mxu0 0
    %525 = vmatpush2.bf16.msra.mxu0 0
    %526 = vmatprep.subr.bf16.mxu0 0
    %527 = vmatpush2.bf16.msra.mxu0 0
    %528 = vmatprep.subr.bf16.mxu0 0
    %529 = vmatpush2.bf16.msra.mxu0 0
    %530 = vmatprep.subr.bf16.mxu0 0
    %531 = vmatpush2.bf16.msra.mxu0 0
    %532 = vmatprep.subr.bf16.mxu0 0
    %533 = vmatpush2.bf16.msra.mxu0 0
    %534 = vmatprep.subr.bf16.mxu0 0
    %535 = vmatpush2.bf16.msra.mxu0 0
    %536 = vmatprep.subr.bf16.mxu0 0
    %537 = vmatpush2.bf16.msra.mxu0 0
    %538 = vmatprep.subr.bf16.mxu0 0
    %539 = vmatpush2.bf16.msra.mxu0 0
    %540 = vmatprep.mubr.bf16.mxu0 0
    %541 = vmatmul.mubr.bf16.gmra.mxu0 %v476
    %v542 = vpop.f32.mrf.mxu0
    %v543 = vadd.f32 %v484, %v542
    %v544 = vpop.f32.mrf.mxu0
    %v545 = vpop.f32.mrf.mxu0
    %v546 = vadd.f32 %v485, %v545
    %v547 = vpop.f32.mrf.mxu0
    %548 = vmatprep.mubr.bf16.mxu0 0
    %549 = vmatmul.mubr.bf16.gmra.mxu0 %v477
    %v550 = vpop.f32.mrf.mxu0
    %v551 = vadd.f32 %v486, %v550
    %v552 = vpop.f32.mrf.mxu0
    %v553 = vpop.f32.mrf.mxu0
    %v554 = vadd.f32 %v487, %v553
    %v555 = vpop.f32.mrf.mxu0
    %556 = vmatprep.mubr.bf16.mxu0 0
    %557 = vmatmul.mubr.bf16.gmra.mxu0 %v478
    %v558 = vpop.f32.mrf.mxu0
    %v559 = vadd.f32 %v488, %v558
    %v560 = vpop.f32.mrf.mxu0
    %v561 = vpop.f32.mrf.mxu0
    %v562 = vadd.f32 %v489, %v561
    %v563 = vpop.f32.mrf.mxu0
    %564 = vmatprep.mubr.bf16.mxu0 0
    %565 = vmatmul.mubr.bf16.gmra.mxu0 %v479
    %v566 = vpop.f32.mrf.mxu0
    %v567 = vadd.f32 %v490, %v566
    %v568 = vpop.f32.mrf.mxu0
    %v569 = vpop.f32.mrf.mxu0
    %v570 = vadd.f32 %v491, %v569
    %v571 = vpop.f32.mrf.mxu0
    %572 = vmatprep.mubr.bf16.mxu0 0
    %573 = vmatmul.mubr.bf16.gmra.mxu0 %v480
    %v574 = vpop.f32.mrf.mxu0
    %v575 = vadd.f32 %v492, %v574
    %v576 = vpop.f32.mrf.mxu0
    %v577 = vpop.f32.mrf.mxu0
    %v578 = vadd.f32 %v493, %v577
    %v579 = vpop.f32.mrf.mxu0
    %580 = vmatprep.mubr.bf16.mxu0 0
    %581 = vmatmul.mubr.bf16.gmra.mxu0 %v481
    %v582 = vpop.f32.mrf.mxu0
    %v583 = vadd.f32 %v494, %v582
    %v584 = vpop.f32.mrf.mxu0
    %v585 = vpop.f32.mrf.mxu0
    %v586 = vadd.f32 %v495, %v585
    %v587 = vpop.f32.mrf.mxu0
    %588 = vmatprep.mubr.bf16.mxu0 0
    %589 = vmatmul.mubr.bf16.gmra.mxu0 %v482
    %v590 = vpop.f32.mrf.mxu0
    %v591 = vadd.f32 %v496, %v590
    %v592 = vpop.f32.mrf.mxu0
    %v593 = vpop.f32.mrf.mxu0
    %v594 = vadd.f32 %v497, %v593
    %v595 = vpop.f32.mrf.mxu0
    %596 = vmatprep.mubr.bf16.mxu0 0
    %597 = vmatmul.mubr.bf16.gmra.mxu0 %v483
    %v598 = vpop.f32.mrf.mxu0
    %v599 = vadd.f32 %v498, %v598
    %v600 = vpop.f32.mrf.mxu0
    %v601 = vpop.f32.mrf.mxu0
    %v602 = vadd.f32 %v499, %v601
    %v603 = vpop.f32.mrf.mxu0
    %604 = vdwg.mxu0
    %v605 = vpack.c.bf16 %v546, %v543
    %v606 = vpack.c.bf16 %v554, %v551
    %v607 = vpack.c.bf16 %v562, %v559
    %v608 = vpack.c.bf16 %v570, %v567
    %v609 = vpack.c.bf16 %v578, %v575
    %v610 = vpack.c.bf16 %v586, %v583
    %v611 = vpack.c.bf16 %v594, %v591
    %v612 = vpack.c.bf16 %v602, %v599
    %613 = vmatprep.subr.bf16.mxu0 0
    %614 = vmatpush1.bf16.msra.mxu0 %v612
    %615 = vmatprep.subr.bf16.mxu0 0
    %616 = vmatpush1.bf16.msra.mxu0 %v611
    %617 = vmatprep.subr.bf16.mxu0 0
    %618 = vmatpush1.bf16.msra.mxu0 %v610
    %619 = vmatprep.subr.bf16.mxu0 0
    %620 = vmatpush1.bf16.msra.mxu0 %v609
    %621 = vmatprep.subr.bf16.mxu0 0
    %622 = vmatpush1.bf16.msra.mxu0 %v608
    %623 = vmatprep.subr.bf16.mxu0 0
    %624 = vmatpush1.bf16.msra.mxu0 %v607
    %625 = vmatprep.subr.bf16.mxu0 0
    %626 = vmatpush1.bf16.msra.mxu0 %v606
    %627 = vmatprep.subr.bf16.mxu0 0
    %628 = vmatpush1.bf16.msra.mxu0 %v605
    %629 = vmatprep.subr.bf16.mxu0 0
    %630 = vmatpush2.bf16.msra.mxu0 0
    %631 = vmatprep.subr.bf16.mxu0 0
    %632 = vmatpush2.bf16.msra.mxu0 0
    %633 = vmatprep.subr.bf16.mxu0 0
    %634 = vmatpush2.bf16.msra.mxu0 0
    %635 = vmatprep.subr.bf16.mxu0 0
    %636 = vmatpush2.bf16.msra.mxu0 0
    %637 = vmatprep.subr.bf16.mxu0 0
    %638 = vmatpush2.bf16.msra.mxu0 0
    %639 = vmatprep.subr.bf16.mxu0 0
    %640 = vmatpush2.bf16.msra.mxu0 0
    %641 = vmatprep.subr.bf16.mxu0 0
    %642 = vmatpush2.bf16.msra.mxu0 0
    %643 = vmatprep.subr.bf16.mxu0 0
    %644 = vmatpush2.bf16.msra.mxu0 0
    %645 = vmatprep.mubr.bf16.mxu0 0
    %646 = vmatmul.mubr.bf16.gmra.mxu0 %v476
    %v647 = vpop.f32.mrf.mxu0
    %v648 = vadd.f32 %v484, %v647
    %v649 = vpop.f32.mrf.mxu0
    %v650 = vpop.f32.mrf.mxu0
    %v651 = vadd.f32 %v485, %v650
    %v652 = vpop.f32.mrf.mxu0
    %653 = vmatprep.mubr.bf16.mxu0 0
    %654 = vmatmul.mubr.bf16.gmra.mxu0 %v477
    %v655 = vpop.f32.mrf.mxu0
    %v656 = vadd.f32 %v486, %v655
    %v657 = vpop.f32.mrf.mxu0
    %v658 = vpop.f32.mrf.mxu0
    %v659 = vadd.f32 %v487, %v658
    %v660 = vpop.f32.mrf.mxu0
    %661 = vmatprep.mubr.bf16.mxu0 0
    %662 = vmatmul.mubr.bf16.gmra.mxu0 %v478
    %v663 = vpop.f32.mrf.mxu0
    %v664 = vadd.f32 %v488, %v663
    %v665 = vpop.f32.mrf.mxu0
    %v666 = vpop.f32.mrf.mxu0
    %v667 = vadd.f32 %v489, %v666
    %v668 = vpop.f32.mrf.mxu0
    %669 = vmatprep.mubr.bf16.mxu0 0
    %670 = vmatmul.mubr.bf16.gmra.mxu0 %v479
    %v671 = vpop.f32.mrf.mxu0
    %v672 = vadd.f32 %v490, %v671
    %v673 = vpop.f32.mrf.mxu0
    %v674 = vpop.f32.mrf.mxu0
    %v675 = vadd.f32 %v491, %v674
    %v676 = vpop.f32.mrf.mxu0
    %677 = vmatprep.mubr.bf16.mxu0 0
    %678 = vmatmul.mubr.bf16.gmra.mxu0 %v480
    %v679 = vpop.f32.mrf.mxu0
    %v680 = vadd.f32 %v492, %v679
    %v681 = vpop.f32.mrf.mxu0
    %v682 = vpop.f32.mrf.mxu0
    %v683 = vadd.f32 %v493, %v682
    %v684 = vpop.f32.mrf.mxu0
    %685 = vmatprep.mubr.bf16.mxu0 0
    %686 = vmatmul.mubr.bf16.gmra.mxu0 %v481
    %v687 = vpop.f32.mrf.mxu0
    %v688 = vadd.f32 %v494, %v687
    %v689 = vpop.f32.mrf.mxu0
    %v690 = vpop.f32.mrf.mxu0
    %v691 = vadd.f32 %v495, %v690
    %v692 = vpop.f32.mrf.mxu0
    %693 = vmatprep.mubr.bf16.mxu0 0
    %694 = vmatmul.mubr.bf16.gmra.mxu0 %v482
    %v695 = vpop.f32.mrf.mxu0
    %v696 = vadd.f32 %v496, %v695
    %v697 = vpop.f32.mrf.mxu0
    %v698 = vpop.f32.mrf.mxu0
    %v699 = vadd.f32 %v497, %v698
    %v700 = vpop.f32.mrf.mxu0
    %701 = vmatprep.mubr.bf16.mxu0 0
    %702 = vmatmul.mubr.bf16.gmra.mxu0 %v483
    %v703 = vpop.f32.mrf.mxu0
    %v704 = vadd.f32 %v498, %v703
    %v705 = vpop.f32.mrf.mxu0
    %v706 = vpop.f32.mrf.mxu0
    %v707 = vadd.f32 %v499, %v706
    %v708 = vpop.f32.mrf.mxu0
    %709 = vdwg.mxu0
    %v710 = vpack.c.bf16 %v651, %v648
    %v711 = vpack.c.bf16 %v659, %v656
    %v712 = vpack.c.bf16 %v667, %v664
    %v713 = vpack.c.bf16 %v675, %v672
    %v714 = vpack.c.bf16 %v683, %v680
    %v715 = vpack.c.bf16 %v691, %v688
    %v716 = vpack.c.bf16 %v699, %v696
    %v717 = vpack.c.bf16 %v707, %v704
    %718 = vmatprep.subr.bf16.mxu0 0
    %719 = vmatpush1.bf16.msra.mxu0 %v717
    %720 = vmatprep.subr.bf16.mxu0 0
    %721 = vmatpush1.bf16.msra.mxu0 %v716
    %722 = vmatprep.subr.bf16.mxu0 0
    %723 = vmatpush1.bf16.msra.mxu0 %v715
    %724 = vmatprep.subr.bf16.mxu0 0
    %725 = vmatpush1.bf16.msra.mxu0 %v714
    %726 = vmatprep.subr.bf16.mxu0 0
    %727 = vmatpush1.bf16.msra.mxu0 %v713
    %728 = vmatprep.subr.bf16.mxu0 0
    %729 = vmatpush1.bf16.msra.mxu0 %v712
    %730 = vmatprep.subr.bf16.mxu0 0
    %731 = vmatpush1.bf16.msra.mxu0 %v711
    %732 = vmatprep.subr.bf16.mxu0 0
    %733 = vmatpush1.bf16.msra.mxu0 %v710
    %734 = vmatprep.subr.bf16.mxu0 0
    %735 = vmatpush2.bf16.msra.mxu0 0
    %736 = vmatprep.subr.bf16.mxu0 0
    %737 = vmatpush2.bf16.msra.mxu0 0
    %738 = vmatprep.subr.bf16.mxu0 0
    %739 = vmatpush2.bf16.msra.mxu0 0
    %740 = vmatprep.subr.bf16.mxu0 0
    %741 = vmatpush2.bf16.msra.mxu0 0
    %742 = vmatprep.subr.bf16.mxu0 0
    %743 = vmatpush2.bf16.msra.mxu0 0
    %744 = vmatprep.subr.bf16.mxu0 0
    %745 = vmatpush2.bf16.msra.mxu0 0
    %746 = vmatprep.subr.bf16.mxu0 0
    %747 = vmatpush2.bf16.msra.mxu0 0
    %748 = vmatprep.subr.bf16.mxu0 0
    %749 = vmatpush2.bf16.msra.mxu0 0
    %750 = vmatprep.mubr.bf16.mxu0 0
    %751 = vmatmul.mubr.bf16.gmra.mxu0 %v476
    %v752 = vpop.f32.mrf.mxu0
    %v753 = vadd.f32 %v484, %v752
    %v754 = vpop.f32.mrf.mxu0
    %v755 = vpop.f32.mrf.mxu0
    %v756 = vadd.f32 %v485, %v755
    %v757 = vpop.f32.mrf.mxu0
    %758 = vmatprep.mubr.bf16.mxu0 0
    %759 = vmatmul.mubr.bf16.gmra.mxu0 %v477
    %v760 = vpop.f32.mrf.mxu0
    %v761 = vadd.f32 %v486, %v760
    %v762 = vpop.f32.mrf.mxu0
    %v763 = vpop.f32.mrf.mxu0
    %v764 = vadd.f32 %v487, %v763
    %v765 = vpop.f32.mrf.mxu0
    %766 = vmatprep.mubr.bf16.mxu0 0
    %767 = vmatmul.mubr.bf16.gmra.mxu0 %v478
    %v768 = vpop.f32.mrf.mxu0
    %v769 = vadd.f32 %v488, %v768
    %v770 = vpop.f32.mrf.mxu0
    %v771 = vpop.f32.mrf.mxu0
    %v772 = vadd.f32 %v489, %v771
    %v773 = vpop.f32.mrf.mxu0
    %774 = vmatprep.mubr.bf16.mxu0 0
    %775 = vmatmul.mubr.bf16.gmra.mxu0 %v479
    %v776 = vpop.f32.mrf.mxu0
    %v777 = vadd.f32 %v490, %v776
    %v778 = vpop.f32.mrf.mxu0
    %v779 = vpop.f32.mrf.mxu0
    %v780 = vadd.f32 %v491, %v779
    %v781 = vpop.f32.mrf.mxu0
    %782 = vmatprep.mubr.bf16.mxu0 0
    %783 = vmatmul.mubr.bf16.gmra.mxu0 %v480
    %v784 = vpop.f32.mrf.mxu0
    %v785 = vadd.f32 %v492, %v784
    %v786 = vpop.f32.mrf.mxu0
    %v787 = vpop.f32.mrf.mxu0
    %v788 = vadd.f32 %v493, %v787
    %v789 = vpop.f32.mrf.mxu0
    %790 = vmatprep.mubr.bf16.mxu0 0
    %791 = vmatmul.mubr.bf16.gmra.mxu0 %v481
    %v792 = vpop.f32.mrf.mxu0
    %v793 = vadd.f32 %v494, %v792
    %v794 = vpop.f32.mrf.mxu0
    %v795 = vpop.f32.mrf.mxu0
    %v796 = vadd.f32 %v495, %v795
    %v797 = vpop.f32.mrf.mxu0
    %798 = vmatprep.mubr.bf16.mxu0 0
    %799 = vmatmul.mubr.bf16.gmra.mxu0 %v482
    %v800 = vpop.f32.mrf.mxu0
    %v801 = vadd.f32 %v496, %v800
    %v802 = vpop.f32.mrf.mxu0
    %v803 = vpop.f32.mrf.mxu0
    %v804 = vadd.f32 %v497, %v803
    %v805 = vpop.f32.mrf.mxu0
    %806 = vmatprep.mubr.bf16.mxu0 0
    %807 = vmatmul.mubr.bf16.gmra.mxu0 %v483
    %v808 = vpop.f32.mrf.mxu0
    %v809 = vadd.f32 %v498, %v808
    %v810 = vpop.f32.mrf.mxu0
    %v811 = vpop.f32.mrf.mxu0
    %v812 = vadd.f32 %v499, %v811
    %v813 = vpop.f32.mrf.mxu0
    %814 = vdwg.mxu0
    %v815 = vpack.c.bf16 %v756, %v753
    %v816 = vpack.c.bf16 %v764, %v761
    %v817 = vpack.c.bf16 %v772, %v769
    %v818 = vpack.c.bf16 %v780, %v777
    %v819 = vpack.c.bf16 %v788, %v785
    %v820 = vpack.c.bf16 %v796, %v793
    %v821 = vpack.c.bf16 %v804, %v801
    %v822 = vpack.c.bf16 %v812, %v809
    %823 = vmatprep.subr.bf16.mxu0 0
    %824 = vmatpush1.bf16.msra.mxu0 %v822
    %825 = vmatprep.subr.bf16.mxu0 0
    %826 = vmatpush1.bf16.msra.mxu0 %v821
    %827 = vmatprep.subr.bf16.mxu0 0
    %828 = vmatpush1.bf16.msra.mxu0 %v820
    %829 = vmatprep.subr.bf16.mxu0 0
    %830 = vmatpush1.bf16.msra.mxu0 %v819
    %831 = vmatprep.subr.bf16.mxu0 0
    %832 = vmatpush1.bf16.msra.mxu0 %v818
    %833 = vmatprep.subr.bf16.mxu0 0
    %834 = vmatpush1.bf16.msra.mxu0 %v817
    %835 = vmatprep.subr.bf16.mxu0 0
    %836 = vmatpush1.bf16.msra.mxu0 %v816
    %837 = vmatprep.subr.bf16.mxu0 0
    %838 = vmatpush1.bf16.msra.mxu0 %v815
    %839 = vmatprep.subr.bf16.mxu0 0
    %840 = vmatpush2.bf16.msra.mxu0 0
    %841 = vmatprep.subr.bf16.mxu0 0
    %842 = vmatpush2.bf16.msra.mxu0 0
    %843 = vmatprep.subr.bf16.mxu0 0
    %844 = vmatpush2.bf16.msra.mxu0 0
    %845 = vmatprep.subr.bf16.mxu0 0
    %846 = vmatpush2.bf16.msra.mxu0 0
    %847 = vmatprep.subr.bf16.mxu0 0
    %848 = vmatpush2.bf16.msra.mxu0 0
    %849 = vmatprep.subr.bf16.mxu0 0
    %850 = vmatpush2.bf16.msra.mxu0 0
    %851 = vmatprep.subr.bf16.mxu0 0
    %852 = vmatpush2.bf16.msra.mxu0 0
    %853 = vmatprep.subr.bf16.mxu0 0
    %854 = vmatpush2.bf16.msra.mxu0 0
    %855 = vmatprep.mubr.bf16.mxu0 0
    %856 = vmatmul.mubr.bf16.gmra.mxu0 %v476
    %v857 = vpop.f32.mrf.mxu0
    %v858 = vadd.f32 %v484, %v857
    %v859 = vpop.f32.mrf.mxu0
    %v860 = vpop.f32.mrf.mxu0
    %v861 = vadd.f32 %v485, %v860
    %v862 = vpop.f32.mrf.mxu0
    %863 = vmatprep.mubr.bf16.mxu0 0
    %864 = vmatmul.mubr.bf16.gmra.mxu0 %v477
    %v865 = vpop.f32.mrf.mxu0
    %v866 = vadd.f32 %v486, %v865
    %v867 = vpop.f32.mrf.mxu0
    %v868 = vpop.f32.mrf.mxu0
    %v869 = vadd.f32 %v487, %v868
    %v870 = vpop.f32.mrf.mxu0
    %871 = vmatprep.mubr.bf16.mxu0 0
    %872 = vmatmul.mubr.bf16.gmra.mxu0 %v478
    %v873 = vpop.f32.mrf.mxu0
    %v874 = vadd.f32 %v488, %v873
    %v875 = vpop.f32.mrf.mxu0
    %v876 = vpop.f32.mrf.mxu0
    %v877 = vadd.f32 %v489, %v876
    %v878 = vpop.f32.mrf.mxu0
    %879 = vmatprep.mubr.bf16.mxu0 0
    %880 = vmatmul.mubr.bf16.gmra.mxu0 %v479
    %v881 = vpop.f32.mrf.mxu0
    %v882 = vadd.f32 %v490, %v881
    %v883 = vpop.f32.mrf.mxu0
    %v884 = vpop.f32.mrf.mxu0
    %v885 = vadd.f32 %v491, %v884
    %v886 = vpop.f32.mrf.mxu0
    %887 = vmatprep.mubr.bf16.mxu0 0
    %888 = vmatmul.mubr.bf16.gmra.mxu0 %v480
    %v889 = vpop.f32.mrf.mxu0
    %v890 = vadd.f32 %v492, %v889
    %v891 = vpop.f32.mrf.mxu0
    %v892 = vpop.f32.mrf.mxu0
    %v893 = vadd.f32 %v493, %v892
    %v894 = vpop.f32.mrf.mxu0
    %895 = vmatprep.mubr.bf16.mxu0 0
    %896 = vmatmul.mubr.bf16.gmra.mxu0 %v481
    %v897 = vpop.f32.mrf.mxu0
    %v898 = vadd.f32 %v494, %v897
    %v899 = vpop.f32.mrf.mxu0
    %v900 = vpop.f32.mrf.mxu0
    %v901 = vadd.f32 %v495, %v900
    %v902 = vpop.f32.mrf.mxu0
    %903 = vmatprep.mubr.bf16.mxu0 0
    %904 = vmatmul.mubr.bf16.gmra.mxu0 %v482
    %v905 = vpop.f32.mrf.mxu0
    %v906 = vadd.f32 %v496, %v905
    %v907 = vpop.f32.mrf.mxu0
    %v908 = vpop.f32.mrf.mxu0
    %v909 = vadd.f32 %v497, %v908
    %v910 = vpop.f32.mrf.mxu0
    %911 = vmatprep.mubr.bf16.mxu0 0
    %912 = vmatmul.mubr.bf16.gmra.mxu0 %v483
    %v913 = vpop.f32.mrf.mxu0
    %v914 = vadd.f32 %v498, %v913
    %v915 = vpop.f32.mrf.mxu0
    %v916 = vpop.f32.mrf.mxu0
    %v917 = vadd.f32 %v499, %v916
    %v918 = vpop.f32.mrf.mxu0
    %919 = vdwg.mxu0
    %v920 = vpack.c.bf16 %v861, %v858
    %v921 = vpack.c.bf16 %v869, %v866
    %v922 = vpack.c.bf16 %v877, %v874
    %v923 = vpack.c.bf16 %v885, %v882
    %v924 = vpack.c.bf16 %v893, %v890
    %v925 = vpack.c.bf16 %v901, %v898
    %v926 = vpack.c.bf16 %v909, %v906
    %v927 = vpack.c.bf16 %v917, %v914
    %928 = vmatprep.subr.bf16.mxu0 0
    %929 = vmatpush1.bf16.msra.mxu0 %v927
    %930 = vmatprep.subr.bf16.mxu0 0
    %931 = vmatpush1.bf16.msra.mxu0 %v926
    %932 = vmatprep.subr.bf16.mxu0 0
    %933 = vmatpush1.bf16.msra.mxu0 %v925
    %934 = vmatprep.subr.bf16.mxu0 0
    %935 = vmatpush1.bf16.msra.mxu0 %v924
    %936 = vmatprep.subr.bf16.mxu0 0
    %937 = vmatpush1.bf16.msra.mxu0 %v923
    %938 = vmatprep.subr.bf16.mxu0 0
    %939 = vmatpush1.bf16.msra.mxu0 %v922
    %940 = vmatprep.subr.bf16.mxu0 0
    %941 = vmatpush1.bf16.msra.mxu0 %v921
    %942 = vmatprep.subr.bf16.mxu0 0
    %943 = vmatpush1.bf16.msra.mxu0 %v920
    %944 = vmatprep.subr.bf16.mxu0 0
    %945 = vmatpush2.bf16.msra.mxu0 0
    %946 = vmatprep.subr.bf16.mxu0 0
    %947 = vmatpush2.bf16.msra.mxu0 0
    %948 = vmatprep.subr.bf16.mxu0 0
    %949 = vmatpush2.bf16.msra.mxu0 0
    %950 = vmatprep.subr.bf16.mxu0 0
    %951 = vmatpush2.bf16.msra.mxu0 0
    %952 = vmatprep.subr.bf16.mxu0 0
    %953 = vmatpush2.bf16.msra.mxu0 0
    %954 = vmatprep.subr.bf16.mxu0 0
    %955 = vmatpush2.bf16.msra.mxu0 0
    %956 = vmatprep.subr.bf16.mxu0 0
    %957 = vmatpush2.bf16.msra.mxu0 0
    %958 = vmatprep.subr.bf16.mxu0 0
    %959 = vmatpush2.bf16.msra.mxu0 0
    %960 = vmatprep.mubr.bf16.mxu0 0
    %961 = vmatmul.mubr.bf16.gmra.mxu0 %v476
    %v962 = vpop.f32.mrf.mxu0
    %v963 = vadd.f32 %v484, %v962
    %v964 = vpop.f32.mrf.mxu0
    %v965 = vpop.f32.mrf.mxu0
    %v966 = vadd.f32 %v485, %v965
    %v967 = vpop.f32.mrf.mxu0
    %968 = vmatprep.mubr.bf16.mxu0 0
    %969 = vmatmul.mubr.bf16.gmra.mxu0 %v477
    %v970 = vpop.f32.mrf.mxu0
    %v971 = vadd.f32 %v486, %v970
    %v972 = vpop.f32.mrf.mxu0
    %v973 = vpop.f32.mrf.mxu0
    %v974 = vadd.f32 %v487, %v973
    %v975 = vpop.f32.mrf.mxu0
    %976 = vmatprep.mubr.bf16.mxu0 0
    %977 = vmatmul.mubr.bf16.gmra.mxu0 %v478
    %v978 = vpop.f32.mrf.mxu0
    %v979 = vadd.f32 %v488, %v978
    %v980 = vpop.f32.mrf.mxu0
    %v981 = vpop.f32.mrf.mxu0
    %v982 = vadd.f32 %v489, %v981
    %v983 = vpop.f32.mrf.mxu0
    %984 = vmatprep.mubr.bf16.mxu0 0
    %985 = vmatmul.mubr.bf16.gmra.mxu0 %v479
    %v986 = vpop.f32.mrf.mxu0
    %v987 = vadd.f32 %v490, %v986
    %v988 = vpop.f32.mrf.mxu0
    %v989 = vpop.f32.mrf.mxu0
    %v990 = vadd.f32 %v491, %v989
    %v991 = vpop.f32.mrf.mxu0
    %992 = vmatprep.mubr.bf16.mxu0 0
    %993 = vmatmul.mubr.bf16.gmra.mxu0 %v480
    %v994 = vpop.f32.mrf.mxu0
    %v995 = vadd.f32 %v492, %v994
    %v996 = vpop.f32.mrf.mxu0
    %v997 = vpop.f32.mrf.mxu0
    %v998 = vadd.f32 %v493, %v997
    %v999 = vpop.f32.mrf.mxu0
    %1000 = vmatprep.mubr.bf16.mxu0 0
    %1001 = vmatmul.mubr.bf16.gmra.mxu0 %v481
    %v1002 = vpop.f32.mrf.mxu0
    %v1003 = vadd.f32 %v494, %v1002
    %v1004 = vpop.f32.mrf.mxu0
    %v1005 = vpop.f32.mrf.mxu0
    %v1006 = vadd.f32 %v495, %v1005
    %v1007 = vpop.f32.mrf.mxu0
    %1008 = vmatprep.mubr.bf16.mxu0 0
    %1009 = vmatmul.mubr.bf16.gmra.mxu0 %v482
    %v1010 = vpop.f32.mrf.mxu0
    %v1011 = vadd.f32 %v496, %v1010
    %v1012 = vpop.f32.mrf.mxu0
    %v1013 = vpop.f32.mrf.mxu0
    %v1014 = vadd.f32 %v497, %v1013
    %v1015 = vpop.f32.mrf.mxu0
    %1016 = vmatprep.mubr.bf16.mxu0 0
    %1017 = vmatmul.mubr.bf16.gmra.mxu0 %v483
    %v1018 = vpop.f32.mrf.mxu0
    %v1019 = vadd.f32 %v498, %v1018
    %v1020 = vpop.f32.mrf.mxu0
    %v1021 = vpop.f32.mrf.mxu0
    %v1022 = vadd.f32 %v499, %v1021
    %v1023 = vpop.f32.mrf.mxu0
    %1024 = vdwg.mxu0
    %v1025 = vpack.c.bf16 %v966, %v963
    %v1026 = vpack.c.bf16 %v974, %v971
    %v1027 = vpack.c.bf16 %v982, %v979
    %v1028 = vpack.c.bf16 %v990, %v987
    %v1029 = vpack.c.bf16 %v998, %v995
    %v1030 = vpack.c.bf16 %v1006, %v1003
    %v1031 = vpack.c.bf16 %v1014, %v1011
    %v1032 = vpack.c.bf16 %v1022, %v1019
    %1033 = vmatprep.subr.bf16.mxu0 0
    %1034 = vmatpush1.bf16.msra.mxu0 %v1032
    %1035 = vmatprep.subr.bf16.mxu0 0
    %1036 = vmatpush1.bf16.msra.mxu0 %v1031
    %1037 = vmatprep.subr.bf16.mxu0 0
    %1038 = vmatpush1.bf16.msra.mxu0 %v1030
    %1039 = vmatprep.subr.bf16.mxu0 0
    %1040 = vmatpush1.bf16.msra.mxu0 %v1029
    %1041 = vmatprep.subr.bf16.mxu0 0
    %1042 = vmatpush1.bf16.msra.mxu0 %v1028
    %1043 = vmatprep.subr.bf16.mxu0 0
    %1044 = vmatpush1.bf16.msra.mxu0 %v1027
    %1045 = vmatprep.subr.bf16.mxu0 0
    %1046 = vmatpush1.bf16.msra.mxu0 %v1026
    %1047 = vmatprep.subr.bf16.mxu0 0
    %1048 = vmatpush1.bf16.msra.mxu0 %v1025
    %1049 = vmatprep.subr.bf16.mxu0 0
    %1050 = vmatpush2.bf16.msra.mxu0 0
    %1051 = vmatprep.subr.bf16.mxu0 0
    %1052 = vmatpush2.bf16.msra.mxu0 0
    %1053 = vmatprep.subr.bf16.mxu0 0
    %1054 = vmatpush2.bf16.msra.mxu0 0
    %1055 = vmatprep.subr.bf16.mxu0 0
    %1056 = vmatpush2.bf16.msra.mxu0 0
    %1057 = vmatprep.subr.bf16.mxu0 0
    %1058 = vmatpush2.bf16.msra.mxu0 0
    %1059 = vmatprep.subr.bf16.mxu0 0
    %1060 = vmatpush2.bf16.msra.mxu0 0
    %1061 = vmatprep.subr.bf16.mxu0 0
    %1062 = vmatpush2.bf16.msra.mxu0 0
    %1063 = vmatprep.subr.bf16.mxu0 0
    %1064 = vmatpush2.bf16.msra.mxu0 0
    %1065 = vmatprep.mubr.bf16.mxu0 0
    %1066 = vmatmul.mubr.bf16.gmra.mxu0 %v476
    %v1067 = vpop.f32.mrf.mxu0
    %v1068 = vadd.f32 %v484, %v1067
    %v1069 = vpop.f32.mrf.mxu0
    %v1070 = vpop.f32.mrf.mxu0
    %v1071 = vadd.f32 %v485, %v1070
    %v1072 = vpop.f32.mrf.mxu0
    %1073 = vmatprep.mubr.bf16.mxu0 0
    %1074 = vmatmul.mubr.bf16.gmra.mxu0 %v477
    %v1075 = vpop.f32.mrf.mxu0
    %v1076 = vadd.f32 %v486, %v1075
    %v1077 = vpop.f32.mrf.mxu0
    %v1078 = vpop.f32.mrf.mxu0
    %v1079 = vadd.f32 %v487, %v1078
    %v1080 = vpop.f32.mrf.mxu0
    %1081 = vmatprep.mubr.bf16.mxu0 0
    %1082 = vmatmul.mubr.bf16.gmra.mxu0 %v478
    %v1083 = vpop.f32.mrf.mxu0
    %v1084 = vadd.f32 %v488, %v1083
    %v1085 = vpop.f32.mrf.mxu0
    %v1086 = vpop.f32.mrf.mxu0
    %v1087 = vadd.f32 %v489, %v1086
    %v1088 = vpop.f32.mrf.mxu0
    %1089 = vmatprep.mubr.bf16.mxu0 0
    %1090 = vmatmul.mubr.bf16.gmra.mxu0 %v479
    %v1091 = vpop.f32.mrf.mxu0
    %v1092 = vadd.f32 %v490, %v1091
    %v1093 = vpop.f32.mrf.mxu0
    %v1094 = vpop.f32.mrf.mxu0
    %v1095 = vadd.f32 %v491, %v1094
    %v1096 = vpop.f32.mrf.mxu0
    %1097 = vmatprep.mubr.bf16.mxu0 0
    %1098 = vmatmul.mubr.bf16.gmra.mxu0 %v480
    %v1099 = vpop.f32.mrf.mxu0
    %v1100 = vadd.f32 %v492, %v1099
    %v1101 = vpop.f32.mrf.mxu0
    %v1102 = vpop.f32.mrf.mxu0
    %v1103 = vadd.f32 %v493, %v1102
    %v1104 = vpop.f32.mrf.mxu0
    %1105 = vmatprep.mubr.bf16.mxu0 0
    %1106 = vmatmul.mubr.bf16.gmra.mxu0 %v481
    %v1107 = vpop.f32.mrf.mxu0
    %v1108 = vadd.f32 %v494, %v1107
    %v1109 = vpop.f32.mrf.mxu0
    %v1110 = vpop.f32.mrf.mxu0
    %v1111 = vadd.f32 %v495, %v1110
    %v1112 = vpop.f32.mrf.mxu0
    %1113 = vmatprep.mubr.bf16.mxu0 0
    %1114 = vmatmul.mubr.bf16.gmra.mxu0 %v482
    %v1115 = vpop.f32.mrf.mxu0
    %v1116 = vadd.f32 %v496, %v1115
    %v1117 = vpop.f32.mrf.mxu0
    %v1118 = vpop.f32.mrf.mxu0
    %v1119 = vadd.f32 %v497, %v1118
    %v1120 = vpop.f32.mrf.mxu0
    %1121 = vmatprep.mubr.bf16.mxu0 0
    %1122 = vmatmul.mubr.bf16.gmra.mxu0 %v483
    %v1123 = vpop.f32.mrf.mxu0
    %v1124 = vadd.f32 %v498, %v1123
    %v1125 = vpop.f32.mrf.mxu0
    %v1126 = vpop.f32.mrf.mxu0
    %v1127 = vadd.f32 %v499, %v1126
    %v1128 = vpop.f32.mrf.mxu0
    %1129 = vdwg.mxu0
    %v1130 = vpack.c.bf16 %v1071, %v1068
    %v1131 = vpack.c.bf16 %v1079, %v1076
    %v1132 = vpack.c.bf16 %v1087, %v1084
    %v1133 = vpack.c.bf16 %v1095, %v1092
    %v1134 = vpack.c.bf16 %v1103, %v1100
    %v1135 = vpack.c.bf16 %v1111, %v1108
    %v1136 = vpack.c.bf16 %v1119, %v1116
    %v1137 = vpack.c.bf16 %v1127, %v1124
    %1138 = vmatprep.subr.bf16.mxu0 0
    %1139 = vmatpush1.bf16.msra.mxu0 %v1137
    %1140 = vmatprep.subr.bf16.mxu0 0
    %1141 = vmatpush1.bf16.msra.mxu0 %v1136
    %1142 = vmatprep.subr.bf16.mxu0 0
    %1143 = vmatpush1.bf16.msra.mxu0 %v1135
    %1144 = vmatprep.subr.bf16.mxu0 0
    %1145 = vmatpush1.bf16.msra.mxu0 %v1134
    %1146 = vmatprep.subr.bf16.mxu0 0
    %1147 = vmatpush1.bf16.msra.mxu0 %v1133
    %1148 = vmatprep.subr.bf16.mxu0 0
    %1149 = vmatpush1.bf16.msra.mxu0 %v1132
    %1150 = vmatprep.subr.bf16.mxu0 0
    %1151 = vmatpush1.bf16.msra.mxu0 %v1131
    %1152 = vmatprep.subr.bf16.mxu0 0
    %1153 = vmatpush1.bf16.msra.mxu0 %v1130
    %1154 = vmatprep.subr.bf16.mxu0 0
    %1155 = vmatpush2.bf16.msra.mxu0 0
    %1156 = vmatprep.subr.bf16.mxu0 0
    %1157 = vmatpush2.bf16.msra.mxu0 0
    %1158 = vmatprep.subr.bf16.mxu0 0
    %1159 = vmatpush2.bf16.msra.mxu0 0
    %1160 = vmatprep.subr.bf16.mxu0 0
    %1161 = vmatpush2.bf16.msra.mxu0 0
    %1162 = vmatprep.subr.bf16.mxu0 0
    %1163 = vmatpush2.bf16.msra.mxu0 0
    %1164 = vmatprep.subr.bf16.mxu0 0
    %1165 = vmatpush2.bf16.msra.mxu0 0
    %1166 = vmatprep.subr.bf16.mxu0 0
    %1167 = vmatpush2.bf16.msra.mxu0 0
    %1168 = vmatprep.subr.bf16.mxu0 0
    %1169 = vmatpush2.bf16.msra.mxu0 0
    %1170 = vmatprep.mubr.bf16.mxu0 0
    %1171 = vmatmul.mubr.bf16.gmra.mxu0 %v476
    %v1172 = vpop.f32.mrf.mxu0
    %v1173 = vadd.f32 %v484, %v1172
    %v1174 = vpop.f32.mrf.mxu0
    %v1175 = vpop.f32.mrf.mxu0
    %v1176 = vadd.f32 %v485, %v1175
    %v1177 = vpop.f32.mrf.mxu0
    %1178 = vmatprep.mubr.bf16.mxu0 0
    %1179 = vmatmul.mubr.bf16.gmra.mxu0 %v477
    %v1180 = vpop.f32.mrf.mxu0
    %v1181 = vadd.f32 %v486, %v1180
    %v1182 = vpop.f32.mrf.mxu0
    %v1183 = vpop.f32.mrf.mxu0
    %v1184 = vadd.f32 %v487, %v1183
    %v1185 = vpop.f32.mrf.mxu0
    %1186 = vmatprep.mubr.bf16.mxu0 0
    %1187 = vmatmul.mubr.bf16.gmra.mxu0 %v478
    %v1188 = vpop.f32.mrf.mxu0
    %v1189 = vadd.f32 %v488, %v1188
    %v1190 = vpop.f32.mrf.mxu0
    %v1191 = vpop.f32.mrf.mxu0
    %v1192 = vadd.f32 %v489, %v1191
    %v1193 = vpop.f32.mrf.mxu0
    %1194 = vmatprep.mubr.bf16.mxu0 0
    %1195 = vmatmul.mubr.bf16.gmra.mxu0 %v479
    %v1196 = vpop.f32.mrf.mxu0
    %v1197 = vadd.f32 %v490, %v1196
    %v1198 = vpop.f32.mrf.mxu0
    %v1199 = vpop.f32.mrf.mxu0
    %v1200 = vadd.f32 %v491, %v1199
    %v1201 = vpop.f32.mrf.mxu0
    %1202 = vmatprep.mubr.bf16.mxu0 0
    %1203 = vmatmul.mubr.bf16.gmra.mxu0 %v480
    %v1204 = vpop.f32.mrf.mxu0
    %v1205 = vadd.f32 %v492, %v1204
    %v1206 = vpop.f32.mrf.mxu0
    %v1207 = vpop.f32.mrf.mxu0
    %v1208 = vadd.f32 %v493, %v1207
    %v1209 = vpop.f32.mrf.mxu0
    %1210 = vmatprep.mubr.bf16.mxu0 0
    %1211 = vmatmul.mubr.bf16.gmra.mxu0 %v481
    %v1212 = vpop.f32.mrf.mxu0
    %v1213 = vadd.f32 %v494, %v1212
    %v1214 = vpop.f32.mrf.mxu0
    %v1215 = vpop.f32.mrf.mxu0
    %v1216 = vadd.f32 %v495, %v1215
    %v1217 = vpop.f32.mrf.mxu0
    %1218 = vmatprep.mubr.bf16.mxu0 0
    %1219 = vmatmul.mubr.bf16.gmra.mxu0 %v482
    %v1220 = vpop.f32.mrf.mxu0
    %v1221 = vadd.f32 %v496, %v1220
    %v1222 = vpop.f32.mrf.mxu0
    %v1223 = vpop.f32.mrf.mxu0
    %v1224 = vadd.f32 %v497, %v1223
    %v1225 = vpop.f32.mrf.mxu0
    %1226 = vmatprep.mubr.bf16.mxu0 0
    %1227 = vmatmul.mubr.bf16.gmra.mxu0 %v483
    %v1228 = vpop.f32.mrf.mxu0
    %v1229 = vadd.f32 %v498, %v1228
    %v1230 = vpop.f32.mrf.mxu0
    %v1231 = vpop.f32.mrf.mxu0
    %v1232 = vadd.f32 %v499, %v1231
    %v1233 = vpop.f32.mrf.mxu0
    %1234 = vdwg.mxu0
    %v1235 = vpack.c.bf16 %v1176, %v1173
    %v1236 = vpack.c.bf16 %v1184, %v1181
    %v1237 = vpack.c.bf16 %v1192, %v1189
    %v1238 = vpack.c.bf16 %v1200, %v1197
    %v1239 = vpack.c.bf16 %v1208, %v1205
    %v1240 = vpack.c.bf16 %v1216, %v1213
    %v1241 = vpack.c.bf16 %v1224, %v1221
    %v1242 = vpack.c.bf16 %v1232, %v1229
    %1243 = vmatprep.subr.bf16.mxu0 0
    %1244 = vmatpush1.bf16.msra.mxu0 %v1242
    %1245 = vmatprep.subr.bf16.mxu0 0
    %1246 = vmatpush1.bf16.msra.mxu0 %v1241
    %1247 = vmatprep.subr.bf16.mxu0 0
    %1248 = vmatpush1.bf16.msra.mxu0 %v1240
    %1249 = vmatprep.subr.bf16.mxu0 0
    %1250 = vmatpush1.bf16.msra.mxu0 %v1239
    %1251 = vmatprep.subr.bf16.mxu0 0
    %1252 = vmatpush1.bf16.msra.mxu0 %v1238
    %1253 = vmatprep.subr.bf16.mxu0 0
    %1254 = vmatpush1.bf16.msra.mxu0 %v1237
    %1255 = vmatprep.subr.bf16.mxu0 0
    %1256 = vmatpush1.bf16.msra.mxu0 %v1236
    %1257 = vmatprep.subr.bf16.mxu0 0
    %1258 = vmatpush1.bf16.msra.mxu0 %v1235
    %1259 = vmatprep.subr.bf16.mxu0 0
    %1260 = vmatpush2.bf16.msra.mxu0 0
    %1261 = vmatprep.subr.bf16.mxu0 0
    %1262 = vmatpush2.bf16.msra.mxu0 0
    %1263 = vmatprep.subr.bf16.mxu0 0
    %1264 = vmatpush2.bf16.msra.mxu0 0
    %1265 = vmatprep.subr.bf16.mxu0 0
    %1266 = vmatpush2.bf16.msra.mxu0 0
    %1267 = vmatprep.subr.bf16.mxu0 0
    %1268 = vmatpush2.bf16.msra.mxu0 0
    %1269 = vmatprep.subr.bf16.mxu0 0
    %1270 = vmatpush2.bf16.msra.mxu0 0
    %1271 = vmatprep.subr.bf16.mxu0 0
    %1272 = vmatpush2.bf16.msra.mxu0 0
    %1273 = vmatprep.subr.bf16.mxu0 0
    %1274 = vmatpush2.bf16.msra.mxu0 0
    %1275 = vmatprep.mubr.bf16.mxu0 0
    %1276 = vmatmul.mubr.bf16.gmra.mxu0 %v476
    %v1277 = vpop.f32.mrf.mxu0
    %v1278 = vadd.f32 %v484, %v1277
    %v1279 = vpop.f32.mrf.mxu0
    %v1280 = vpop.f32.mrf.mxu0
    %v1281 = vadd.f32 %v485, %v1280
    %v1282 = vpop.f32.mrf.mxu0
    %1283 = vmatprep.mubr.bf16.mxu0 0
    %1284 = vmatmul.mubr.bf16.gmra.mxu0 %v477
    %v1285 = vpop.f32.mrf.mxu0
    %v1286 = vadd.f32 %v486, %v1285
    %v1287 = vpop.f32.mrf.mxu0
    %v1288 = vpop.f32.mrf.mxu0
    %v1289 = vadd.f32 %v487, %v1288
    %v1290 = vpop.f32.mrf.mxu0
    %1291 = vmatprep.mubr.bf16.mxu0 0
    %1292 = vmatmul.mubr.bf16.gmra.mxu0 %v478
    %v1293 = vpop.f32.mrf.mxu0
    %v1294 = vadd.f32 %v488, %v1293
    %v1295 = vpop.f32.mrf.mxu0
    %v1296 = vpop.f32.mrf.mxu0
    %v1297 = vadd.f32 %v489, %v1296
    %v1298 = vpop.f32.mrf.mxu0
    %1299 = vmatprep.mubr.bf16.mxu0 0
    %1300 = vmatmul.mubr.bf16.gmra.mxu0 %v479
    %v1301 = vpop.f32.mrf.mxu0
    %v1302 = vadd.f32 %v490, %v1301
    %v1303 = vpop.f32.mrf.mxu0
    %v1304 = vpop.f32.mrf.mxu0
    %v1305 = vadd.f32 %v491, %v1304
    %v1306 = vpop.f32.mrf.mxu0
    %1307 = vmatprep.mubr.bf16.mxu0 0
    %1308 = vmatmul.mubr.bf16.gmra.mxu0 %v480
    %v1309 = vpop.f32.mrf.mxu0
    %v1310 = vadd.f32 %v492, %v1309
    %v1311 = vpop.f32.mrf.mxu0
    %v1312 = vpop.f32.mrf.mxu0
    %v1313 = vadd.f32 %v493, %v1312
    %v1314 = vpop.f32.mrf.mxu0
    %1315 = vmatprep.mubr.bf16.mxu0 0
    %1316 = vmatmul.mubr.bf16.gmra.mxu0 %v481
    %v1317 = vpop.f32.mrf.mxu0
    %v1318 = vadd.f32 %v494, %v1317
    %v1319 = vpop.f32.mrf.mxu0
    %v1320 = vpop.f32.mrf.mxu0
    %v1321 = vadd.f32 %v495, %v1320
    %v1322 = vpop.f32.mrf.mxu0
    %1323 = vmatprep.mubr.bf16.mxu0 0
    %1324 = vmatmul.mubr.bf16.gmra.mxu0 %v482
    %v1325 = vpop.f32.mrf.mxu0
    %v1326 = vadd.f32 %v496, %v1325
    %v1327 = vpop.f32.mrf.mxu0
    %v1328 = vpop.f32.mrf.mxu0
    %v1329 = vadd.f32 %v497, %v1328
    %v1330 = vpop.f32.mrf.mxu0
    %1331 = vmatprep.mubr.bf16.mxu0 0
    %1332 = vmatmul.mubr.bf16.gmra.mxu0 %v483
    %v1333 = vpop.f32.mrf.mxu0
    %v1334 = vadd.f32 %v498, %v1333
    %v1335 = vpop.f32.mrf.mxu0
    %v1336 = vpop.f32.mrf.mxu0
    %v1337 = vadd.f32 %v499, %v1336
    %v1338 = vpop.f32.mrf.mxu0
    %1339 = vdwg.mxu0
    %v1340 = vpack.c.bf16 %v1281, %v1278
    %v1341 = vpack.c.bf16 %v1289, %v1286
    %v1342 = vpack.c.bf16 %v1297, %v1294
    %v1343 = vpack.c.bf16 %v1305, %v1302
    %v1344 = vpack.c.bf16 %v1313, %v1310
    %v1345 = vpack.c.bf16 %v1321, %v1318
    %v1346 = vpack.c.bf16 %v1329, %v1326
    %v1347 = vpack.c.bf16 %v1337, %v1334
    %1348 = vmatprep.subr.bf16.mxu0 0
    %1349 = vmatpush1.bf16.msra.mxu0 %v1347
    %1350 = vmatprep.subr.bf16.mxu0 0
    %1351 = vmatpush1.bf16.msra.mxu0 %v1346
    %1352 = vmatprep.subr.bf16.mxu0 0
    %1353 = vmatpush1.bf16.msra.mxu0 %v1345
    %1354 = vmatprep.subr.bf16.mxu0 0
    %1355 = vmatpush1.bf16.msra.mxu0 %v1344
    %1356 = vmatprep.subr.bf16.mxu0 0
    %1357 = vmatpush1.bf16.msra.mxu0 %v1343
    %1358 = vmatprep.subr.bf16.mxu0 0
    %1359 = vmatpush1.bf16.msra.mxu0 %v1342
    %1360 = vmatprep.subr.bf16.mxu0 0
    %1361 = vmatpush1.bf16.msra.mxu0 %v1341
    %1362 = vmatprep.subr.bf16.mxu0 0
    %1363 = vmatpush1.bf16.msra.mxu0 %v1340
    %1364 = vmatprep.subr.bf16.mxu0 0
    %1365 = vmatpush2.bf16.msra.mxu0 0
    %1366 = vmatprep.subr.bf16.mxu0 0
    %1367 = vmatpush2.bf16.msra.mxu0 0
    %1368 = vmatprep.subr.bf16.mxu0 0
    %1369 = vmatpush2.bf16.msra.mxu0 0
    %1370 = vmatprep.subr.bf16.mxu0 0
    %1371 = vmatpush2.bf16.msra.mxu0 0
    %1372 = vmatprep.subr.bf16.mxu0 0
    %1373 = vmatpush2.bf16.msra.mxu0 0
    %1374 = vmatprep.subr.bf16.mxu0 0
    %1375 = vmatpush2.bf16.msra.mxu0 0
    %1376 = vmatprep.subr.bf16.mxu0 0
    %1377 = vmatpush2.bf16.msra.mxu0 0
    %1378 = vmatprep.subr.bf16.mxu0 0
    %1379 = vmatpush2.bf16.msra.mxu0 0
    %1380 = vmatprep.mubr.bf16.mxu0 0
    %1381 = vmatmul.mubr.bf16.gmra.mxu0 %v476
    %v1382 = vpop.f32.mrf.mxu0
    %v1383 = vadd.f32 %v484, %v1382
    %v1384 = vpop.f32.mrf.mxu0
    %v1385 = vpop.f32.mrf.mxu0
    %v1386 = vadd.f32 %v485, %v1385
    %v1387 = vpop.f32.mrf.mxu0
    %1388 = vmatprep.mubr.bf16.mxu0 0
    %1389 = vmatmul.mubr.bf16.gmra.mxu0 %v477
    %v1390 = vpop.f32.mrf.mxu0
    %v1391 = vadd.f32 %v486, %v1390
    %v1392 = vpop.f32.mrf.mxu0
    %v1393 = vpop.f32.mrf.mxu0
    %v1394 = vadd.f32 %v487, %v1393
    %v1395 = vpop.f32.mrf.mxu0
    %1396 = vmatprep.mubr.bf16.mxu0 0
    %1397 = vmatmul.mubr.bf16.gmra.mxu0 %v478
    %v1398 = vpop.f32.mrf.mxu0
    %v1399 = vadd.f32 %v488, %v1398
    %v1400 = vpop.f32.mrf.mxu0
    %v1401 = vpop.f32.mrf.mxu0
    %v1402 = vadd.f32 %v489, %v1401
    %v1403 = vpop.f32.mrf.mxu0
    %1404 = vmatprep.mubr.bf16.mxu0 0
    %1405 = vmatmul.mubr.bf16.gmra.mxu0 %v479
    %v1406 = vpop.f32.mrf.mxu0
    %v1407 = vadd.f32 %v490, %v1406
    %v1408 = vpop.f32.mrf.mxu0
    %v1409 = vpop.f32.mrf.mxu0
    %v1410 = vadd.f32 %v491, %v1409
    %v1411 = vpop.f32.mrf.mxu0
    %1412 = vmatprep.mubr.bf16.mxu0 0
    %1413 = vmatmul.mubr.bf16.gmra.mxu0 %v480
    %v1414 = vpop.f32.mrf.mxu0
    %v1415 = vadd.f32 %v492, %v1414
    %v1416 = vpop.f32.mrf.mxu0
    %v1417 = vpop.f32.mrf.mxu0
    %v1418 = vadd.f32 %v493, %v1417
    %v1419 = vpop.f32.mrf.mxu0
    %1420 = vmatprep.mubr.bf16.mxu0 0
    %1421 = vmatmul.mubr.bf16.gmra.mxu0 %v481
    %v1422 = vpop.f32.mrf.mxu0
    %v1423 = vadd.f32 %v494, %v1422
    %v1424 = vpop.f32.mrf.mxu0
    %v1425 = vpop.f32.mrf.mxu0
    %v1426 = vadd.f32 %v495, %v1425
    %v1427 = vpop.f32.mrf.mxu0
    %1428 = vmatprep.mubr.bf16.mxu0 0
    %1429 = vmatmul.mubr.bf16.gmra.mxu0 %v482
    %v1430 = vpop.f32.mrf.mxu0
    %v1431 = vadd.f32 %v496, %v1430
    %v1432 = vpop.f32.mrf.mxu0
    %v1433 = vpop.f32.mrf.mxu0
    %v1434 = vadd.f32 %v497, %v1433
    %v1435 = vpop.f32.mrf.mxu0
    %1436 = vmatprep.mubr.bf16.mxu0 0
    %1437 = vmatmul.mubr.bf16.gmra.mxu0 %v483
    %v1438 = vpop.f32.mrf.mxu0
    %v1439 = vadd.f32 %v498, %v1438
    %v1440 = vpop.f32.mrf.mxu0
    %v1441 = vpop.f32.mrf.mxu0
    %v1442 = vadd.f32 %v499, %v1441
    %v1443 = vpop.f32.mrf.mxu0
    %1444 = vdwg.mxu0
    %v1445 = vpack.c.bf16 %v1386, %v1383
    %v1446 = vpack.c.bf16 %v1394, %v1391
    %v1447 = vpack.c.bf16 %v1402, %v1399
    %v1448 = vpack.c.bf16 %v1410, %v1407
    %v1449 = vpack.c.bf16 %v1418, %v1415
    %v1450 = vpack.c.bf16 %v1426, %v1423
    %v1451 = vpack.c.bf16 %v1434, %v1431
    %v1452 = vpack.c.bf16 %v1442, %v1439
    %1453 = vmatprep.subr.bf16.mxu0 0
    %1454 = vmatpush1.bf16.msra.mxu0 %v1452
    %1455 = vmatprep.subr.bf16.mxu0 0
    %1456 = vmatpush1.bf16.msra.mxu0 %v1451
    %1457 = vmatprep.subr.bf16.mxu0 0
    %1458 = vmatpush1.bf16.msra.mxu0 %v1450
    %1459 = vmatprep.subr.bf16.mxu0 0
    %1460 = vmatpush1.bf16.msra.mxu0 %v1449
    %1461 = vmatprep.subr.bf16.mxu0 0
    %1462 = vmatpush1.bf16.msra.mxu0 %v1448
    %1463 = vmatprep.subr.bf16.mxu0 0
    %1464 = vmatpush1.bf16.msra.mxu0 %v1447
    %1465 = vmatprep.subr.bf16.mxu0 0
    %1466 = vmatpush1.bf16.msra.mxu0 %v1446
    %1467 = vmatprep.subr.bf16.mxu0 0
    %1468 = vmatpush1.bf16.msra.mxu0 %v1445
    %1469 = vmatprep.subr.bf16.mxu0 0
    %1470 = vmatpush2.bf16.msra.mxu0 0
    %1471 = vmatprep.subr.bf16.mxu0 0
    %1472 = vmatpush2.bf16.msra.mxu0 0
    %1473 = vmatprep.subr.bf16.mxu0 0
    %1474 = vmatpush2.bf16.msra.mxu0 0
    %1475 = vmatprep.subr.bf16.mxu0 0
    %1476 = vmatpush2.bf16.msra.mxu0 0
    %1477 = vmatprep.subr.bf16.mxu0 0
    %1478 = vmatpush2.bf16.msra.mxu0 0
    %1479 = vmatprep.subr.bf16.mxu0 0
    %1480 = vmatpush2.bf16.msra.mxu0 0
    %1481 = vmatprep.subr.bf16.mxu0 0
    %1482 = vmatpush2.bf16.msra.mxu0 0
    %1483 = vmatprep.subr.bf16.mxu0 0
    %1484 = vmatpush2.bf16.msra.mxu0 0
    %1485 = vmatprep.mubr.bf16.mxu0 0
    %1486 = vmatmul.mubr.bf16.gmra.mxu0 %v476
    %v1487 = vpop.f32.mrf.mxu0
    %v1488 = vadd.f32 %v484, %v1487
    %v1489 = vpop.f32.mrf.mxu0
    %v1490 = vpop.f32.mrf.mxu0
    %v1491 = vadd.f32 %v485, %v1490
    %v1492 = vpop.f32.mrf.mxu0
    %1493 = vmatprep.mubr.bf16.mxu0 0
    %1494 = vmatmul.mubr.bf16.gmra.mxu0 %v477
    %v1495 = vpop.f32.mrf.mxu0
    %v1496 = vadd.f32 %v486, %v1495
    %v1497 = vpop.f32.mrf.mxu0
    %v1498 = vpop.f32.mrf.mxu0
    %v1499 = vadd.f32 %v487, %v1498
    %v1500 = vpop.f32.mrf.mxu0
    %1501 = vmatprep.mubr.bf16.mxu0 0
    %1502 = vmatmul.mubr.bf16.gmra.mxu0 %v478
    %v1503 = vpop.f32.mrf.mxu0
    %v1504 = vadd.f32 %v488, %v1503
    %v1505 = vpop.f32.mrf.mxu0
    %v1506 = vpop.f32.mrf.mxu0
    %v1507 = vadd.f32 %v489, %v1506
    %v1508 = vpop.f32.mrf.mxu0
    %1509 = vmatprep.mubr.bf16.mxu0 0
    %1510 = vmatmul.mubr.bf16.gmra.mxu0 %v479
    %v1511 = vpop.f32.mrf.mxu0
    %v1512 = vadd.f32 %v490, %v1511
    %v1513 = vpop.f32.mrf.mxu0
    %v1514 = vpop.f32.mrf.mxu0
    %v1515 = vadd.f32 %v491, %v1514
    %v1516 = vpop.f32.mrf.mxu0
    %1517 = vmatprep.mubr.bf16.mxu0 0
    %1518 = vmatmul.mubr.bf16.gmra.mxu0 %v480
    %v1519 = vpop.f32.mrf.mxu0
    %v1520 = vadd.f32 %v492, %v1519
    %v1521 = vpop.f32.mrf.mxu0
    %v1522 = vpop.f32.mrf.mxu0
    %v1523 = vadd.f32 %v493, %v1522
    %v1524 = vpop.f32.mrf.mxu0
    %1525 = vmatprep.mubr.bf16.mxu0 0
    %1526 = vmatmul.mubr.bf16.gmra.mxu0 %v481
    %v1527 = vpop.f32.mrf.mxu0
    %v1528 = vadd.f32 %v494, %v1527
    %v1529 = vpop.f32.mrf.mxu0
    %v1530 = vpop.f32.mrf.mxu0
    %v1531 = vadd.f32 %v495, %v1530
    %v1532 = vpop.f32.mrf.mxu0
    %1533 = vmatprep.mubr.bf16.mxu0 0
    %1534 = vmatmul.mubr.bf16.gmra.mxu0 %v482
    %v1535 = vpop.f32.mrf.mxu0
    %v1536 = vadd.f32 %v496, %v1535
    %v1537 = vpop.f32.mrf.mxu0
    %v1538 = vpop.f32.mrf.mxu0
    %v1539 = vadd.f32 %v497, %v1538
    %v1540 = vpop.f32.mrf.mxu0
    %1541 = vmatprep.mubr.bf16.mxu0 0
    %1542 = vmatmul.mubr.bf16.gmra.mxu0 %v483
    %v1543 = vpop.f32.mrf.mxu0
    %v1544 = vadd.f32 %v498, %v1543
    %v1545 = vpop.f32.mrf.mxu0
    %v1546 = vpop.f32.mrf.mxu0
    %v1547 = vadd.f32 %v499, %v1546
    %v1548 = vpop.f32.mrf.mxu0
    %1549 = vdwg.mxu0
    %v1550 = vlaneseq
    %v1551 = vand.u32 %v1550, 127
    %vm1552 = vcmp.lt.s32.totalorder %v1551, 16
    %v1553 = vsel %vm1552, %v1488, -1e+30
    %v1554 = vsel %vm1552, %v1491, -1e+30
    %v1555 = vsel %vm1552, %v1496, -1e+30
    %v1556 = vsel %vm1552, %v1499, -1e+30
    %v1557 = vsel %vm1552, %v1504, -1e+30
    %v1558 = vsel %vm1552, %v1507, -1e+30
    %v1559 = vsel %vm1552, %v1512, -1e+30
    %v1560 = vsel %vm1552, %v1515, -1e+30
    %v1561 = vsel %vm1552, %v1520, -1e+30
    %v1562 = vsel %vm1552, %v1523, -1e+30
    %v1563 = vsel %vm1552, %v1528, -1e+30
    %v1564 = vsel %vm1552, %v1531, -1e+30
    %v1565 = vsel %vm1552, %v1536, -1e+30
    %v1566 = vsel %vm1552, %v1539, -1e+30
    %v1567 = vsel %vm1552, %v1544, -1e+30
    %v1568 = vsel %vm1552, %v1547, -1e+30
    %1569 = vmax.xlane.f32.xlu0 %v1553
    %v1570 = vpop.xlane.xlu0 %1569
    %1571 = vmax.xlane.f32.xlu0 %v1554
    %v1572 = vpop.xlane.xlu0 %1571
    %1573 = vmax.xlane.f32.xlu0 %v1555
    %v1574 = vpop.xlane.xlu0 %1573
    %1575 = vmax.xlane.f32.xlu0 %v1556
    %v1576 = vpop.xlane.xlu0 %1575
    %1577 = vmax.xlane.f32.xlu0 %v1557
    %v1578 = vpop.xlane.xlu0 %1577
    %1579 = vmax.xlane.f32.xlu0 %v1558
    %v1580 = vpop.xlane.xlu0 %1579
    %1581 = vmax.xlane.f32.xlu0 %v1559
    %v1582 = vpop.xlane.xlu0 %1581
    %1583 = vmax.xlane.f32.xlu0 %v1560
    %v1584 = vpop.xlane.xlu0 %1583
    %1585 = vmax.xlane.f32.xlu0 %v1561
    %v1586 = vpop.xlane.xlu0 %1585
    %1587 = vmax.xlane.f32.xlu0 %v1562
    %v1588 = vpop.xlane.xlu0 %1587
    %1589 = vmax.xlane.f32.xlu0 %v1563
    %v1590 = vpop.xlane.xlu0 %1589
    %1591 = vmax.xlane.f32.xlu0 %v1564
    %v1592 = vpop.xlane.xlu0 %1591
    %1593 = vmax.xlane.f32.xlu0 %v1565
    %v1594 = vpop.xlane.xlu0 %1593
    %1595 = vmax.xlane.f32.xlu0 %v1566
    %v1596 = vpop.xlane.xlu0 %1595
    %1597 = vmax.xlane.f32.xlu0 %v1567
    %v1598 = vpop.xlane.xlu0 %1597
    %1599 = vmax.xlane.f32.xlu0 %v1568
    %v1600 = vpop.xlane.xlu0 %1599
    %v1601 = vsub.f32 %v1553, %v1570
    %v1602 = vsub.f32 %v1554, %v1572
    %v1603 = vsub.f32 %v1555, %v1574
    %v1604 = vsub.f32 %v1556, %v1576
    %v1605 = vsub.f32 %v1557, %v1578
    %v1606 = vsub.f32 %v1558, %v1580
    %v1607 = vsub.f32 %v1559, %v1582
    %v1608 = vsub.f32 %v1560, %v1584
    %v1609 = vsub.f32 %v1561, %v1586
    %v1610 = vsub.f32 %v1562, %v1588
    %v1611 = vsub.f32 %v1563, %v1590
    %v1612 = vsub.f32 %v1564, %v1592
    %v1613 = vsub.f32 %v1565, %v1594
    %v1614 = vsub.f32 %v1566, %v1596
    %v1615 = vsub.f32 %v1567, %v1598
    %v1616 = vsub.f32 %v1568, %v1600
    %v1617 = vmul.f32 %v1601, 1.442695
    %v1618 = vpow.pop %v1617
    %v1619 = vmul.f32 %v1602, 1.442695
    %v1620 = vpow.pop %v1619
    %v1621 = vmul.f32 %v1603, 1.442695
    %v1622 = vpow.pop %v1621
    %v1623 = vmul.f32 %v1604, 1.442695
    %v1624 = vpow.pop %v1623
    %v1625 = vmul.f32 %v1605, 1.442695
    %v1626 = vpow.pop %v1625
    %v1627 = vmul.f32 %v1606, 1.442695
    %v1628 = vpow.pop %v1627
    %v1629 = vmul.f32 %v1607, 1.442695
    %v1630 = vpow.pop %v1629
    %v1631 = vmul.f32 %v1608, 1.442695
    %v1632 = vpow.pop %v1631
    %v1633 = vmul.f32 %v1609, 1.442695
    %v1634 = vpow.pop %v1633
    %v1635 = vmul.f32 %v1610, 1.442695
    %v1636 = vpow.pop %v1635
    %v1637 = vmul.f32 %v1611, 1.442695
    %v1638 = vpow.pop %v1637
    %v1639 = vmul.f32 %v1612, 1.442695
    %v1640 = vpow.pop %v1639
    %v1641 = vmul.f32 %v1613, 1.442695
    %v1642 = vpow.pop %v1641
    %v1643 = vmul.f32 %v1614, 1.442695
    %v1644 = vpow.pop %v1643
    %v1645 = vmul.f32 %v1615, 1.442695
    %v1646 = vpow.pop %v1645
    %v1647 = vmul.f32 %v1616, 1.442695
    %v1648 = vpow.pop %v1647
    %1649 = vadd.xlane.f32.xlu0 %v1618
    %v1650 = vpop.xlane.xlu0 %1649
    %1651 = vadd.xlane.f32.xlu0 %v1620
    %v1652 = vpop.xlane.xlu0 %1651
    %1653 = vadd.xlane.f32.xlu0 %v1622
    %v1654 = vpop.xlane.xlu0 %1653
    %1655 = vadd.xlane.f32.xlu0 %v1624
    %v1656 = vpop.xlane.xlu0 %1655
    %1657 = vadd.xlane.f32.xlu0 %v1626
    %v1658 = vpop.xlane.xlu0 %1657
    %1659 = vadd.xlane.f32.xlu0 %v1628
    %v1660 = vpop.xlane.xlu0 %1659
    %1661 = vadd.xlane.f32.xlu0 %v1630
    %v1662 = vpop.xlane.xlu0 %1661
    %1663 = vadd.xlane.f32.xlu0 %v1632
    %v1664 = vpop.xlane.xlu0 %1663
    %1665 = vadd.xlane.f32.xlu0 %v1634
    %v1666 = vpop.xlane.xlu0 %1665
    %1667 = vadd.xlane.f32.xlu0 %v1636
    %v1668 = vpop.xlane.xlu0 %1667
    %1669 = vadd.xlane.f32.xlu0 %v1638
    %v1670 = vpop.xlane.xlu0 %1669
    %1671 = vadd.xlane.f32.xlu0 %v1640
    %v1672 = vpop.xlane.xlu0 %1671
    %1673 = vadd.xlane.f32.xlu0 %v1642
    %v1674 = vpop.xlane.xlu0 %1673
    %1675 = vadd.xlane.f32.xlu0 %v1644
    %v1676 = vpop.xlane.xlu0 %1675
    %1677 = vadd.xlane.f32.xlu0 %v1646
    %v1678 = vpop.xlane.xlu0 %1677
    %1679 = vadd.xlane.f32.xlu0 %v1648
    %v1680 = vpop.xlane.xlu0 %1679
    %v1681 = vlog2.pop %v1650
    %v1682 = vmul.f32 %v1681, 0.6931472
    %v1683 = vlog2.pop %v1652
    %v1684 = vmul.f32 %v1683, 0.6931472
    %v1685 = vlog2.pop %v1654
    %v1686 = vmul.f32 %v1685, 0.6931472
    %v1687 = vlog2.pop %v1656
    %v1688 = vmul.f32 %v1687, 0.6931472
    %v1689 = vlog2.pop %v1658
    %v1690 = vmul.f32 %v1689, 0.6931472
    %v1691 = vlog2.pop %v1660
    %v1692 = vmul.f32 %v1691, 0.6931472
    %v1693 = vlog2.pop %v1662
    %v1694 = vmul.f32 %v1693, 0.6931472
    %v1695 = vlog2.pop %v1664
    %v1696 = vmul.f32 %v1695, 0.6931472
    %v1697 = vlog2.pop %v1666
    %v1698 = vmul.f32 %v1697, 0.6931472
    %v1699 = vlog2.pop %v1668
    %v1700 = vmul.f32 %v1699, 0.6931472
    %v1701 = vlog2.pop %v1670
    %v1702 = vmul.f32 %v1701, 0.6931472
    %v1703 = vlog2.pop %v1672
    %v1704 = vmul.f32 %v1703, 0.6931472
    %v1705 = vlog2.pop %v1674
    %v1706 = vmul.f32 %v1705, 0.6931472
    %v1707 = vlog2.pop %v1676
    %v1708 = vmul.f32 %v1707, 0.6931472
    %v1709 = vlog2.pop %v1678
    %v1710 = vmul.f32 %v1709, 0.6931472
    %v1711 = vlog2.pop %v1680
    %v1712 = vmul.f32 %v1711, 0.6931472
    %v1713 = vadd.f32 %v1682, %v1570
    %v1714 = vadd.f32 %v1684, %v1572
    %v1715 = vadd.f32 %v1686, %v1574
    %v1716 = vadd.f32 %v1688, %v1576
    %v1717 = vadd.f32 %v1690, %v1578
    %v1718 = vadd.f32 %v1692, %v1580
    %v1719 = vadd.f32 %v1694, %v1582
    %v1720 = vadd.f32 %v1696, %v1584
    %v1721 = vadd.f32 %v1698, %v1586
    %v1722 = vadd.f32 %v1700, %v1588
    %v1723 = vadd.f32 %v1702, %v1590
    %v1724 = vadd.f32 %v1704, %v1592
    %v1725 = vadd.f32 %v1706, %v1594
    %v1726 = vadd.f32 %v1708, %v1596
    %v1727 = vadd.f32 %v1710, %v1598
    %v1728 = vadd.f32 %v1712, %v1600
    %v1729 = vsub.f32 %v1488, %v1713
    %v1730 = vsub.f32 %v1491, %v1714
    %v1731 = vsub.f32 %v1496, %v1715
    %v1732 = vsub.f32 %v1499, %v1716
    %v1733 = vsub.f32 %v1504, %v1717
    %v1734 = vsub.f32 %v1507, %v1718
    %v1735 = vsub.f32 %v1512, %v1719
    %v1736 = vsub.f32 %v1515, %v1720
    %v1737 = vsub.f32 %v1520, %v1721
    %v1738 = vsub.f32 %v1523, %v1722
    %v1739 = vsub.f32 %v1528, %v1723
    %v1740 = vsub.f32 %v1531, %v1724
    %v1741 = vsub.f32 %v1536, %v1725
    %v1742 = vsub.f32 %v1539, %v1726
    %v1743 = vsub.f32 %v1544, %v1727
    %v1744 = vsub.f32 %v1547, %v1728
    %1745 = vst [vmem:[#allocation5] sm:$0xff] %v1729
    %1746 = vst [vmem:[#allocation5 + $0x8] sm:$0xff] %v1730
    %1747 = vst [vmem:[#allocation5 + $0x10] sm:$0xff] %v1731
    %1748 = vst [vmem:[#allocation5 + $0x18] sm:$0xff] %v1732
    %1749 = vst [vmem:[#allocation5 + $0x20] sm:$0xff] %v1733
    %1750 = vst [vmem:[#allocation5 + $0x28] sm:$0xff] %v1734
    %1751 = vst [vmem:[#allocation5 + $0x30] sm:$0xff] %v1735
    %1752 = vst [vmem:[#allocation5 + $0x38] sm:$0xff] %v1736
    %1753 = vst [vmem:[#allocation5 + $0x40] sm:$0xff] %v1737
    %1754 = vst [vmem:[#allocation5 + $0x48] sm:$0xff] %v1738
    %1755 = vst [vmem:[#allocation5 + $0x50] sm:$0xff] %v1739
    %1756 = vst [vmem:[#allocation5 + $0x58] sm:$0xff] %v1740
    %1757 = vst [vmem:[#allocation5 + $0x60] sm:$0xff] %v1741
    %1758 = vst [vmem:[#allocation5 + $0x68] sm:$0xff] %v1742
    %1759 = vst [vmem:[#allocation5 + $0x70] sm:$0xff] %v1743
    %1760 = vst [vmem:[#allocation5 + $0x78] sm:$0xff] %v1744
    // Predicated region
    $region30: #{tpu_custom_call.1} parent=1 // pred_check
      _
    $region31: #{tpu_custom_call.1} parent=1 // pred_check_branch
      %1762 = sbr.rel (0) target = $region33
    $region32: #{tpu_custom_call.1} parent=1 // pred_region
      %s1764 = ssub.s32 2048, 2048
      %1765 = vsyncadd [#allocation4], %s1764
      %s1766 = sshll.u32 [#allocation5], 4
      %s1767 = int_to_ptr.vmem [resolvable:$true] %s1766
      %1772 = dma.vmem_to_hbm [thread:$0]  %s1767, 2048, %s6, [#allocation4], 128, 128, 8
    $region33: #{tpu_custom_call.1} parent=1 // pred_fallthru
      _
    // Predicated region
    $region34: #{tpu_custom_call.1} parent=1 // pred_check
      _
    $region35: #{tpu_custom_call.1} parent=1 // pred_check_branch
      %1774 = sbr.rel (0) target = $region37
    $region36: #{tpu_custom_call.1} parent=1 // pred_region
      %1775 = dma.done [#allocation4], 2048
    $region37: #{tpu_custom_call.1} parent=1 // pred_fallthru
      _
    %1776 = vsyncpa [#allocation3], 1
    %1777 = vsyncpa [#allocation4], 1

</llo_original>
